<compile_context>
chip_gen: v5e
topology: v5e:2x2
jax: 0.10.0
libtpu: 0.0.40
codegen_flags: <defaults>
</compile_context>

<pallas_src>
import functools
import math

import jax
import jax.numpy as jnp
from jax.experimental import pallas as pl
from jax.experimental.pallas import tpu as pltpu


def _round_up(x, m):
    return ((x + m - 1) // m) * m


def _bn_swish(y, *, eps):
    """Training-mode BatchNorm1d (identity affine) followed by Swish, in f32."""
    mean = jnp.mean(y, axis=0, keepdims=True)
    var = jnp.mean((y - mean) ** 2, axis=0, keepdims=True)  # biased variance
    y = (y - mean) * jax.lax.rsqrt(var + eps)
    return y * jax.nn.sigmoid(y)  # Swish / SiLU


def _ffnn_fused_kernel(x_ref, w0q_ref, s0_ref, b0_ref, wh_ref, bh_ref,
                       wt_ref, bt_ref, o_ref, *, n_hidden, eps):
    """Entire FFNN forward in one kernel invocation (everything resident in VMEM)."""
    # Head: (B, K) bf16 @ (K, Hp).  w0 is stored int8; the cast to bf16 is
    # lossless (integers up to 127), and the per-column dequant scale is folded
    # into the small (B, Hp) epilogue instead of touching the (K, Hp) weight.
    x = x_ref[...]                                            # already bf16
    w0 = w0q_ref[...].astype(jnp.float32).astype(jnp.bfloat16)
    y = jnp.dot(x, w0, preferred_element_type=jnp.float32)
    y = y * s0_ref[...] + b0_ref[...]
    y = _bn_swish(y, eps=eps)

    # Hidden blocks: statically unrolled; wh_ref is (L, Hp, Hp), bh_ref is (L, 1, Hp).
    for l in range(n_hidden):
        y = jnp.dot(y.astype(jnp.bfloat16), wh_ref[l],
                    preferred_element_type=jnp.float32) + bh_ref[l]
        y = _bn_swish(y, eps=eps)

    # Tail: plain Linear (no BN, no activation); output is lane-dense (Np % 128 == 0).
    y = jnp.dot(y.astype(jnp.bfloat16), wt_ref[...],
                preferred_element_type=jnp.float32) + bt_ref[...]
    o_ref[...] = y.astype(o_ref.dtype)


def init_ffnn_params(key, in_features, hidden_features, out_features, num_blocks):
    """Kaiming-normal(fan_out, relu) weights, zero biases, like _initialize_weights."""
    dims = (
        [(in_features, hidden_features)]
        + [(hidden_features, hidden_features)] * (num_blocks - 2)
        + [(hidden_features, out_features)]
    )
    params = []
    for (fan_in, fan_out) in dims:
        key, sub = jax.random.split(key)
        std = math.sqrt(2.0 / fan_out)  # kaiming_normal_, mode='fan_out', relu
        w = jax.random.normal(sub, (fan_in, fan_out), dtype=jnp.float32) * std
        b = jnp.zeros((fan_out,), dtype=jnp.float32)
        params.append((w, b))
    return params


def pack_ffnn_params(params):
    """Pad feature dims to 128-lane multiples, quantize the head weight to int8
    (per-column scale), stack hidden layers, cast hidden/tail weights to bf16.

    Zero-padded feature columns stay exactly zero through BN+Swish and the
    corresponding zero weight rows of the next layer ignore them, so padding is
    semantics-preserving.  Also returns the "effective" f32 params the kernel
    actually multiplies with, for a tight correctness reference.
    """
    assert len(params) >= 2
    (w0, b0), (wt, bt) = params[0], params[-1]
    hidden = params[1:-1]

    K, H = w0.shape
    Hp = _round_up(H, 128)
    N = wt.shape[1]
    Np = _round_up(N, 128)

    def pad_w(w, rows, cols):
        return jnp.pad(w, ((0, rows - w.shape[0]), (0, cols - w.shape[1])))

    def pad_b(b, cols):
        return jnp.pad(b, (0, cols - b.shape[0])).reshape(1, cols)

    # --- head: int8 weight-only quantization, per output column ---
    w0p = pad_w(w0, K, Hp)                                   # (K, Hp) f32
    absmax = jnp.max(jnp.abs(w0p), axis=0)                   # (Hp,)
    s0 = jnp.where(absmax > 0, absmax / 127.0, 1.0).astype(jnp.float32)
    w0q = jnp.clip(jnp.round(w0p / s0), -127, 127).astype(jnp.int8)
    s0_row = s0.reshape(1, Hp)
    b0p = pad_b(b0, Hp).astype(jnp.float32)

    n_hidden = len(hidden)
    if n_hidden > 0:
        wh = jnp.stack([pad_w(w, Hp, Hp) for (w, _) in hidden]).astype(jnp.bfloat16)
        bh = jnp.stack([pad_b(b, Hp) for (_, b) in hidden]).astype(jnp.float32)
    else:  # dummy (never read when n_hidden == 0)
        wh = jnp.zeros((1, Hp, Hp), jnp.bfloat16)
        bh = jnp.zeros((1, 1, Hp), jnp.float32)

    wtp = pad_w(wt, Hp, Np).astype(jnp.bfloat16)
    btp = pad_b(bt, Np).astype(jnp.float32)

    weights = (w0q, s0_row, b0p, wh, bh, wtp, btp)

    # Effective f32 params (dequantized / bf16-rounded), for the reference.
    w0_eff = (w0q.astype(jnp.float32) * s0_row)[:, :H]
    effective = [(w0_eff, b0)]
    for i, (_, b) in enumerate(hidden):
        effective.append((wh[i, :H, :H].astype(jnp.float32), b))
    effective.append((wtp[:H, :N].astype(jnp.float32), bt))

    return weights, n_hidden, N, effective


def ffnn_forward(x_img, weights, *, n_hidden, out_features, eps=1e-5):
    """x_img: (B, 3, 32, 32) NCHW f32. Returns (B, out_features) f32."""
    w0q, s0, b0, wh, bh, wt, bt = weights
    B = x_img.shape[0]
    # nn.Flatten (row-major, matches PyTorch) + bf16 cast in the wrapper so the
    # kernel streams half the input bytes and does no in-kernel cast.
    x = x_img.reshape(B, -1).astype(jnp.bfloat16)
    K = x.shape[1]
    Hp = w0q.shape[1]
    L = wh.shape[0]
    Np = wt.shape[1]

    kernel = functools.partial(_ffnn_fused_kernel, n_hidden=n_hidden, eps=eps)

    out = pl.pallas_call(
        kernel,
        out_shape=jax.ShapeDtypeStruct((B, Np), jnp.float32),
        grid_spec=pltpu.PrefetchScalarGridSpec(
            num_scalar_prefetch=0,
            grid=(1,),  # single step: all weights (< 0.6 MiB) resident in VMEM
            in_specs=[
                pl.BlockSpec((B, K), lambda i: (0, 0)),          # flattened input (bf16)
                pl.BlockSpec((K, Hp), lambda i: (0, 0)),         # head weight (int8)
                pl.BlockSpec((1, Hp), lambda i: (0, 0)),         # head dequant scale (f32)
                pl.BlockSpec((1, Hp), lambda i: (0, 0)),         # head bias (f32)
                pl.BlockSpec((L, Hp, Hp), lambda i: (0, 0, 0)),  # hidden weights (bf16)
                pl.BlockSpec((L, 1, Hp), lambda i: (0, 0, 0)),   # hidden biases (f32)
                pl.BlockSpec((Hp, Np), lambda i: (0, 0)),        # tail weight (bf16)
                pl.BlockSpec((1, Np), lambda i: (0, 0)),         # tail bias (f32)
            ],
            out_specs=pl.BlockSpec((B, Np), lambda i: (0, 0)),   # lane-dense output
        ),
        compiler_params=pltpu.CompilerParams(
            dimension_semantics=("arbitrary",),
            vmem_limit_bytes=32 * 1024 * 1024,
        ),
    )(x, w0q, s0, b0, wh, bh, wt, bt)

    return out[:, :out_features]


def ffnn_reference(x_img, params, *, eps=1e-5):
    """Pure-JAX f32 reference (same training-mode BN semantics)."""
    B = x_img.shape[0]
    x = x_img.reshape(B, -1)
    n_layers = len(params)
    for i, (w, b) in enumerate(params):
        x = x @ w + b
        if i < n_layers - 1:
            mean = jnp.mean(x, axis=0, keepdims=True)
            var = jnp.mean((x - mean) ** 2, axis=0, keepdims=True)
            x = (x - mean) * jax.lax.rsqrt(var + eps)
            x = x * jax.nn.sigmoid(x)
    return x


if __name__ == "__main__":
    # Small, deterministic configuration.
    BATCH = 8
    IN_FEATURES = 3 * 32 * 32  # 3072, fixed by the module's Flatten input
    HIDDEN = 128
    OUT_FEATURES = 32
    NUM_BLOCKS = 4  # head + (NUM_BLOCKS - 2) hidden blocks + tail

    key = jax.random.PRNGKey(0)
    key, xkey = jax.random.split(key)
    x_img = jax.random.normal(xkey, (BATCH, 3, 32, 32), dtype=jnp.float32)

    params = init_ffnn_params(key, IN_FEATURES, HIDDEN, OUT_FEATURES, NUM_BLOCKS)
    weights, n_hidden, out_f, eff_params = pack_ffnn_params(params)

    fwd = jax.jit(functools.partial(
        ffnn_forward, n_hidden=n_hidden, out_features=out_f))
    out = fwd(x_img, weights)
    jax.block_until_ready(out)

    assert out.shape == (BATCH, OUT_FEATURES), out.shape
    assert bool(jnp.all(jnp.isfinite(out)))

    # Tight check vs. reference built from the *effective* (dequantized int8 /
    # bf16-rounded) weights the kernel actually uses -> isolates kernel bugs.
    ref_eff = ffnn_reference(x_img, eff_params)
    err_eff = float(jnp.max(jnp.abs(out - ref_eff)))
    assert err_eff < 0.2, f"max abs diff vs effective-weight reference: {err_eff}"

    # Loose end-to-end accuracy check vs. the original f32 parameters.
    ref_f32 = ffnn_reference(x_img, params)
    err_f32 = float(jnp.max(jnp.abs(out - ref_f32)))
    assert err_f32 < 0.5, f"max abs diff vs f32 reference: {err_f32}"

    print("KERNEL_OK")
</pallas_src>

<mosaic_0001>
module attributes {stable_mosaic.version = 11 : i64} {
  func.func @_ffnn_fused_kernel(%arg0: i32, %arg1: memref<8x3072xbf16, #tpu.memory_space<vmem>>, %arg2: memref<3072x128xi8, #tpu.memory_space<vmem>>, %arg3: memref<1x128xf32, #tpu.memory_space<vmem>>, %arg4: memref<1x128xf32, #tpu.memory_space<vmem>>, %arg5: memref<2x128x128xbf16, #tpu.memory_space<vmem>>, %arg6: memref<2x1x128xf32, #tpu.memory_space<vmem>>, %arg7: memref<128x128xbf16, #tpu.memory_space<vmem>>, %arg8: memref<1x128xf32, #tpu.memory_space<vmem>>, %arg9: memref<8x128xf32, #tpu.memory_space<vmem>>) attributes {dimension_semantics = [#tpu.dimension_semantics<arbitrary>], iteration_bounds = array<i64: 1>, scalar_prefetch = 0 : i64, scratch_operands = 0 : i64, tpu.core_type = #tpu.core_type<tc>, window_params = [{pipeline_mode = #tpu.pipeline_mode<synchronous>, transform_indices = @transform_0, window_bounds = array<i64: 8, 3072>}, {pipeline_mode = #tpu.pipeline_mode<synchronous>, transform_indices = @transform_1, window_bounds = array<i64: 3072, 128>}, {pipeline_mode = #tpu.pipeline_mode<synchronous>, transform_indices = @transform_2, window_bounds = array<i64: 1, 128>}, {pipeline_mode = #tpu.pipeline_mode<synchronous>, transform_indices = @transform_3, window_bounds = array<i64: 1, 128>}, {pipeline_mode = #tpu.pipeline_mode<synchronous>, transform_indices = @transform_4, window_bounds = array<i64: 2, 128, 128>}, {pipeline_mode = #tpu.pipeline_mode<synchronous>, transform_indices = @transform_5, window_bounds = array<i64: 2, 1, 128>}, {pipeline_mode = #tpu.pipeline_mode<synchronous>, transform_indices = @transform_6, window_bounds = array<i64: 128, 128>}, {pipeline_mode = #tpu.pipeline_mode<synchronous>, transform_indices = @transform_7, window_bounds = array<i64: 1, 128>}, {pipeline_mode = #tpu.pipeline_mode<synchronous>, transform_indices = @transform_8, window_bounds = array<i64: 8, 128>}]} {
    %c0 = arith.constant 0 : index
    %c0_0 = arith.constant 0 : index
    %0 = vector.load %arg1[%c0, %c0_0] : memref<8x3072xbf16, #tpu.memory_space<vmem>>, vector<8x3072xbf16>
    %c0_1 = arith.constant 0 : index
    %c0_2 = arith.constant 0 : index
    %1 = vector.load %arg2[%c0_1, %c0_2] : memref<3072x128xi8, #tpu.memory_space<vmem>>, vector<3072x128xi8>
    %2 = arith.sitofp %1 : vector<3072x128xi8> to vector<3072x128xf32>
    %3 = arith.truncf %2 : vector<3072x128xf32> to vector<3072x128xbf16>
    %cst = arith.constant dense<0.000000e+00> : vector<8x128xf32>
    %4 = tpu.matmul %0, %3, %cst {dimension_numbers = #tpu.dot_dimension_numbers<[1], [0], [0], [1], [0, 0, 1, 1], [], []>} : vector<8x3072xbf16>, vector<3072x128xbf16>, vector<8x128xf32> -> vector<8x128xf32>
    %c0_3 = arith.constant 0 : index
    %c0_4 = arith.constant 0 : index
    %5 = vector.load %arg3[%c0_3, %c0_4] : memref<1x128xf32, #tpu.memory_space<vmem>>, vector<1x128xf32>
    %6 = vector.broadcast %5 : vector<1x128xf32> to vector<8x128xf32>
    %7 = arith.mulf %4, %6 : vector<8x128xf32>
    %c0_5 = arith.constant 0 : index
    %c0_6 = arith.constant 0 : index
    %8 = vector.load %arg4[%c0_5, %c0_6] : memref<1x128xf32, #tpu.memory_space<vmem>>, vector<1x128xf32>
    %9 = vector.broadcast %8 : vector<1x128xf32> to vector<8x128xf32>
    %10 = arith.addf %7, %9 : vector<8x128xf32>
    %cst_7 = arith.constant dense<0.000000e+00> : vector<128xf32>
    %11 = vector.multi_reduction <add>, %10, %cst_7 [0] : vector<8x128xf32> to vector<128xf32>
    %12 = vector.shape_cast %11 : vector<128xf32> to vector<1x128xf32>
    %cst_8 = arith.constant 8.000000e+00 : f32
    %13 = vector.broadcast %cst_8 : f32 to vector<1x128xf32>
    %14 = arith.divf %12, %13 : vector<1x128xf32>
    %15 = vector.broadcast %14 : vector<1x128xf32> to vector<8x128xf32>
    %16 = arith.subf %10, %15 : vector<8x128xf32>
    %17 = arith.mulf %16, %16 : vector<8x128xf32>
    %cst_9 = arith.constant dense<0.000000e+00> : vector<128xf32>
    %18 = vector.multi_reduction <add>, %17, %cst_9 [0] : vector<8x128xf32> to vector<128xf32>
    %19 = vector.shape_cast %18 : vector<128xf32> to vector<1x128xf32>
    %cst_10 = arith.constant 8.000000e+00 : f32
    %20 = vector.broadcast %cst_10 : f32 to vector<1x128xf32>
    %21 = arith.divf %19, %20 : vector<1x128xf32>
    %22 = vector.broadcast %14 : vector<1x128xf32> to vector<8x128xf32>
    %23 = arith.subf %10, %22 : vector<8x128xf32>
    %cst_11 = arith.constant 9.99999974E-6 : f32
    %24 = vector.broadcast %cst_11 : f32 to vector<1x128xf32>
    %25 = arith.addf %21, %24 : vector<1x128xf32>
    %26 = math.rsqrt %25 : vector<1x128xf32>
    %27 = vector.broadcast %26 : vector<1x128xf32> to vector<8x128xf32>
    %28 = arith.mulf %23, %27 : vector<8x128xf32>
    %29 = arith.negf %28 : vector<8x128xf32>
    %30 = math.exp %29 : vector<8x128xf32>
    %cst_12 = arith.constant 1.000000e+00 : f32
    %31 = vector.broadcast %cst_12 : f32 to vector<8x128xf32>
    %32 = arith.addf %31, %30 : vector<8x128xf32>
    %33 = arith.divf %31, %32 : vector<8x128xf32>
    %34 = arith.mulf %28, %33 : vector<8x128xf32>
    %35 = arith.truncf %34 : vector<8x128xf32> to vector<8x128xbf16>
    %c0_13 = arith.constant 0 : index
    %c0_14 = arith.constant 0 : index
    %c0_15 = arith.constant 0 : index
    %36 = vector.load %arg5[%c0_13, %c0_14, %c0_15] : memref<2x128x128xbf16, #tpu.memory_space<vmem>>, vector<1x128x128xbf16>
    %37 = vector.shape_cast %36 : vector<1x128x128xbf16> to vector<128x128xbf16>
    %cst_16 = arith.constant dense<0.000000e+00> : vector<8x128xf32>
    %38 = tpu.matmul %35, %37, %cst_16 {dimension_numbers = #tpu.dot_dimension_numbers<[1], [0], [0], [1], [0, 0, 1, 1], [], []>} : vector<8x128xbf16>, vector<128x128xbf16>, vector<8x128xf32> -> vector<8x128xf32>
    %c0_17 = arith.constant 0 : index
    %c0_18 = arith.constant 0 : index
    %c0_19 = arith.constant 0 : index
    %39 = vector.load %arg6[%c0_17, %c0_18, %c0_19] : memref<2x1x128xf32, #tpu.memory_space<vmem>>, vector<1x1x128xf32>
    %40 = vector.shape_cast %39 : vector<1x1x128xf32> to vector<1x128xf32>
    %41 = vector.broadcast %40 : vector<1x128xf32> to vector<8x128xf32>
    %42 = arith.addf %38, %41 : vector<8x128xf32>
    %cst_20 = arith.constant dense<0.000000e+00> : vector<128xf32>
    %43 = vector.multi_reduction <add>, %42, %cst_20 [0] : vector<8x128xf32> to vector<128xf32>
    %44 = vector.shape_cast %43 : vector<128xf32> to vector<1x128xf32>
    %cst_21 = arith.constant 8.000000e+00 : f32
    %45 = vector.broadcast %cst_21 : f32 to vector<1x128xf32>
    %46 = arith.divf %44, %45 : vector<1x128xf32>
    %47 = vector.broadcast %46 : vector<1x128xf32> to vector<8x128xf32>
    %48 = arith.subf %42, %47 : vector<8x128xf32>
    %49 = arith.mulf %48, %48 : vector<8x128xf32>
    %cst_22 = arith.constant dense<0.000000e+00> : vector<128xf32>
    %50 = vector.multi_reduction <add>, %49, %cst_22 [0] : vector<8x128xf32> to vector<128xf32>
    %51 = vector.shape_cast %50 : vector<128xf32> to vector<1x128xf32>
    %cst_23 = arith.constant 8.000000e+00 : f32
    %52 = vector.broadcast %cst_23 : f32 to vector<1x128xf32>
    %53 = arith.divf %51, %52 : vector<1x128xf32>
    %54 = vector.broadcast %46 : vector<1x128xf32> to vector<8x128xf32>
    %55 = arith.subf %42, %54 : vector<8x128xf32>
    %cst_24 = arith.constant 9.99999974E-6 : f32
    %56 = vector.broadcast %cst_24 : f32 to vector<1x128xf32>
    %57 = arith.addf %53, %56 : vector<1x128xf32>
    %58 = math.rsqrt %57 : vector<1x128xf32>
    %59 = vector.broadcast %58 : vector<1x128xf32> to vector<8x128xf32>
    %60 = arith.mulf %55, %59 : vector<8x128xf32>
    %61 = arith.negf %60 : vector<8x128xf32>
    %62 = math.exp %61 : vector<8x128xf32>
    %cst_25 = arith.constant 1.000000e+00 : f32
    %63 = vector.broadcast %cst_25 : f32 to vector<8x128xf32>
    %64 = arith.addf %63, %62 : vector<8x128xf32>
    %65 = arith.divf %63, %64 : vector<8x128xf32>
    %66 = arith.mulf %60, %65 : vector<8x128xf32>
    %67 = arith.truncf %66 : vector<8x128xf32> to vector<8x128xbf16>
    %c1 = arith.constant 1 : index
    %c0_26 = arith.constant 0 : index
    %c0_27 = arith.constant 0 : index
    %68 = vector.load %arg5[%c1, %c0_26, %c0_27] : memref<2x128x128xbf16, #tpu.memory_space<vmem>>, vector<1x128x128xbf16>
    %69 = vector.shape_cast %68 : vector<1x128x128xbf16> to vector<128x128xbf16>
    %cst_28 = arith.constant dense<0.000000e+00> : vector<8x128xf32>
    %70 = tpu.matmul %67, %69, %cst_28 {dimension_numbers = #tpu.dot_dimension_numbers<[1], [0], [0], [1], [0, 0, 1, 1], [], []>} : vector<8x128xbf16>, vector<128x128xbf16>, vector<8x128xf32> -> vector<8x128xf32>
    %c1_29 = arith.constant 1 : index
    %c0_30 = arith.constant 0 : index
    %c0_31 = arith.constant 0 : index
    %71 = vector.load %arg6[%c1_29, %c0_30, %c0_31] : memref<2x1x128xf32, #tpu.memory_space<vmem>>, vector<1x1x128xf32>
    %72 = vector.shape_cast %71 : vector<1x1x128xf32> to vector<1x128xf32>
    %73 = vector.broadcast %72 : vector<1x128xf32> to vector<8x128xf32>
    %74 = arith.addf %70, %73 : vector<8x128xf32>
    %cst_32 = arith.constant dense<0.000000e+00> : vector<128xf32>
    %75 = vector.multi_reduction <add>, %74, %cst_32 [0] : vector<8x128xf32> to vector<128xf32>
    %76 = vector.shape_cast %75 : vector<128xf32> to vector<1x128xf32>
    %cst_33 = arith.constant 8.000000e+00 : f32
    %77 = vector.broadcast %cst_33 : f32 to vector<1x128xf32>
    %78 = arith.divf %76, %77 : vector<1x128xf32>
    %79 = vector.broadcast %78 : vector<1x128xf32> to vector<8x128xf32>
    %80 = arith.subf %74, %79 : vector<8x128xf32>
    %81 = arith.mulf %80, %80 : vector<8x128xf32>
    %cst_34 = arith.constant dense<0.000000e+00> : vector<128xf32>
    %82 = vector.multi_reduction <add>, %81, %cst_34 [0] : vector<8x128xf32> to vector<128xf32>
    %83 = vector.shape_cast %82 : vector<128xf32> to vector<1x128xf32>
    %cst_35 = arith.constant 8.000000e+00 : f32
    %84 = vector.broadcast %cst_35 : f32 to vector<1x128xf32>
    %85 = arith.divf %83, %84 : vector<1x128xf32>
    %86 = vector.broadcast %78 : vector<1x128xf32> to vector<8x128xf32>
    %87 = arith.subf %74, %86 : vector<8x128xf32>
    %cst_36 = arith.constant 9.99999974E-6 : f32
    %88 = vector.broadcast %cst_36 : f32 to vector<1x128xf32>
    %89 = arith.addf %85, %88 : vector<1x128xf32>
    %90 = math.rsqrt %89 : vector<1x128xf32>
    %91 = vector.broadcast %90 : vector<1x128xf32> to vector<8x128xf32>
    %92 = arith.mulf %87, %91 : vector<8x128xf32>
    %93 = arith.negf %92 : vector<8x128xf32>
    %94 = math.exp %93 : vector<8x128xf32>
    %cst_37 = arith.constant 1.000000e+00 : f32
    %95 = vector.broadcast %cst_37 : f32 to vector<8x128xf32>
    %96 = arith.addf %95, %94 : vector<8x128xf32>
    %97 = arith.divf %95, %96 : vector<8x128xf32>
    %98 = arith.mulf %92, %97 : vector<8x128xf32>
    %99 = arith.truncf %98 : vector<8x128xf32> to vector<8x128xbf16>
    %c0_38 = arith.constant 0 : index
    %c0_39 = arith.constant 0 : index
    %100 = vector.load %arg7[%c0_38, %c0_39] : memref<128x128xbf16, #tpu.memory_space<vmem>>, vector<128x128xbf16>
    %cst_40 = arith.constant dense<0.000000e+00> : vector<8x128xf32>
    %101 = tpu.matmul %99, %100, %cst_40 {dimension_numbers = #tpu.dot_dimension_numbers<[1], [0], [0], [1], [0, 0, 1, 1], [], []>} : vector<8x128xbf16>, vector<128x128xbf16>, vector<8x128xf32> -> vector<8x128xf32>
    %c0_41 = arith.constant 0 : index
    %c0_42 = arith.constant 0 : index
    %102 = vector.load %arg8[%c0_41, %c0_42] : memref<1x128xf32, #tpu.memory_space<vmem>>, vector<1x128xf32>
    %103 = vector.broadcast %102 : vector<1x128xf32> to vector<8x128xf32>
    %104 = arith.addf %101, %103 : vector<8x128xf32>
    %c0_43 = arith.constant 0 : index
    %c0_44 = arith.constant 0 : index
    %105 = vector.load %arg9[%c0_43, %c0_44] : memref<8x128xf32, #tpu.memory_space<vmem>>, vector<8x128xf32>
    tpu.vector_store %arg9[%c0_43, %c0_44], %104 {strides = array<i32>} : memref<8x128xf32, #tpu.memory_space<vmem>>, vector<8x128xf32>,
    return
  }
  func.func @transform_0(%arg0: i32) -> (i32, i32) {
    %c0_i32 = arith.constant 0 : i32
    %c0_i32_0 = arith.constant 0 : i32
    %c0_i32_1 = arith.constant 0 : i32
    return %c0_i32, %c0_i32_0 : i32, i32
  }
  func.func @transform_1(%arg0: i32) -> (i32, i32) {
    %c0_i32 = arith.constant 0 : i32
    %c0_i32_0 = arith.constant 0 : i32
    %c0_i32_1 = arith.constant 0 : i32
    return %c0_i32, %c0_i32_0 : i32, i32
  }
  func.func @transform_2(%arg0: i32) -> (i32, i32) {
    %c0_i32 = arith.constant 0 : i32
    %c0_i32_0 = arith.constant 0 : i32
    %c0_i32_1 = arith.constant 0 : i32
    return %c0_i32, %c0_i32_0 : i32, i32
  }
  func.func @transform_3(%arg0: i32) -> (i32, i32) {
    %c0_i32 = arith.constant 0 : i32
    %c0_i32_0 = arith.constant 0 : i32
    %c0_i32_1 = arith.constant 0 : i32
    return %c0_i32, %c0_i32_0 : i32, i32
  }
  func.func @transform_4(%arg0: i32) -> (i32, i32, i32) {
    %c0_i32 = arith.constant 0 : i32
    %c0_i32_0 = arith.constant 0 : i32
    %c0_i32_1 = arith.constant 0 : i32
    %c0_i32_2 = arith.constant 0 : i32
    return %c0_i32, %c0_i32_0, %c0_i32_1 : i32, i32, i32
  }
  func.func @transform_5(%arg0: i32) -> (i32, i32, i32) {
    %c0_i32 = arith.constant 0 : i32
    %c0_i32_0 = arith.constant 0 : i32
    %c0_i32_1 = arith.constant 0 : i32
    %c0_i32_2 = arith.constant 0 : i32
    return %c0_i32, %c0_i32_0, %c0_i32_1 : i32, i32, i32
  }
  func.func @transform_6(%arg0: i32) -> (i32, i32) {
    %c0_i32 = arith.constant 0 : i32
    %c0_i32_0 = arith.constant 0 : i32
    %c0_i32_1 = arith.constant 0 : i32
    return %c0_i32, %c0_i32_0 : i32, i32
  }
  func.func @transform_7(%arg0: i32) -> (i32, i32) {
    %c0_i32 = arith.constant 0 : i32
    %c0_i32_0 = arith.constant 0 : i32
    %c0_i32_1 = arith.constant 0 : i32
    return %c0_i32, %c0_i32_0 : i32, i32
  }
  func.func @transform_8(%arg0: i32) -> (i32, i32) {
    %c0_i32 = arith.constant 0 : i32
    %c0_i32_0 = arith.constant 0 : i32
    %c0_i32_1 = arith.constant 0 : i32
    return %c0_i32, %c0_i32_0 : i32, i32
  }
}

</mosaic_0001>

<llo_original>
// kernel: ffnn_forward.1
$region0: #{ffnn_forward.1}
  #allocation0 [shape = 'u32[]', space=smem, size = 0x4, offset = 0x4, fixed_abs, tag = 'smem constant byte address 0x4 - core index']
  #allocation1 [shape = 'u32[72,128]{1,0:T(1,128)}', space=vmem, size = 0x9000, scoped, tag = 'internal scratch']
  %s0 = inlined_call_operand.vmem [shape: bf16[8,3072], index: 0, kind: input, shape index: {}]
  %s1 = inlined_call_operand.vmem [shape: s8[3072,128], index: 1, kind: input, shape index: {}]
  %s2 = inlined_call_operand.vmem [shape: f32[1,128], index: 2, kind: input, shape index: {}]
  %s3 = inlined_call_operand.vmem [shape: f32[1,128], index: 3, kind: input, shape index: {}]
  %s4 = inlined_call_operand.vmem [shape: bf16[2,128,128], index: 4, kind: input, shape index: {}]
  %s5 = inlined_call_operand.vmem [shape: f32[2,1,128], index: 5, kind: input, shape index: {}]
  %s6 = inlined_call_operand.vmem [shape: bf16[128,128], index: 6, kind: input, shape index: {}]
  %s7 = inlined_call_operand.vmem [shape: f32[1,128], index: 7, kind: input, shape index: {}]
  %s8 = inlined_call_operand.hbm [shape: f32[8,128], index: 8, kind: output, shape index: {}]
  %s9 = sld [smem:[#allocation0]]
  $region42: #{ffnn_forward.1} parent=0
    _
  %s11 = ssub.s32 1, %s9
  %s12 = scalar_select 0, %s11, %s9
  $region1: #{ffnn_forward.1} parent=0
    #allocation2 [shape = 'u8[4096]{0}', space=vmem, size = 0x1000, scoped, tag = 'output window, operand 0, single buffered']
    #allocation3 [shape = 's32[1]{0}', space=sflag, size = 0x4, scoped, tag = 'scoped memory for ffnn_forward.1']
    %13 = vsyncpa [#allocation3], 0
    // Predicated region
    $region2: #{ffnn_forward.1} parent=1 // pred_check
      _
    $region3: #{ffnn_forward.1} parent=1 // pred_check_branch
      %15 = sbr.rel (0) target = $region5
    $region4: #{ffnn_forward.1} parent=1 // pred_region
      _
    $region5: #{ffnn_forward.1} parent=1 // pred_fallthru
      _
    // Predicated region
    $region6: #{ffnn_forward.1} parent=1 // pred_check
      _
    $region7: #{ffnn_forward.1} parent=1 // pred_check_branch
      %17 = sbr.rel (0) target = $region9
    $region8: #{ffnn_forward.1} parent=1 // pred_region
      _
    $region9: #{ffnn_forward.1} parent=1 // pred_fallthru
      _
    // Predicated region
    $region10: #{ffnn_forward.1} parent=1 // pred_check
      _
    $region11: #{ffnn_forward.1} parent=1 // pred_check_branch
      %19 = sbr.rel (0) target = $region13
    $region12: #{ffnn_forward.1} parent=1 // pred_region
      _
    $region13: #{ffnn_forward.1} parent=1 // pred_fallthru
      _
    // Predicated region
    $region14: #{ffnn_forward.1} parent=1 // pred_check
      _
    $region15: #{ffnn_forward.1} parent=1 // pred_check_branch
      %21 = sbr.rel (0) target = $region17
    $region16: #{ffnn_forward.1} parent=1 // pred_region
      _
    $region17: #{ffnn_forward.1} parent=1 // pred_fallthru
      _
    // Predicated region
    $region18: #{ffnn_forward.1} parent=1 // pred_check
      _
    $region19: #{ffnn_forward.1} parent=1 // pred_check_branch
      %23 = sbr.rel (0) target = $region21
    $region20: #{ffnn_forward.1} parent=1 // pred_region
      _
    $region21: #{ffnn_forward.1} parent=1 // pred_fallthru
      _
    // Predicated region
    $region22: #{ffnn_forward.1} parent=1 // pred_check
      _
    $region23: #{ffnn_forward.1} parent=1 // pred_check_branch
      %25 = sbr.rel (0) target = $region25
    $region24: #{ffnn_forward.1} parent=1 // pred_region
      _
    $region25: #{ffnn_forward.1} parent=1 // pred_fallthru
      _
    // Predicated region
    $region26: #{ffnn_forward.1} parent=1 // pred_check
      _
    $region27: #{ffnn_forward.1} parent=1 // pred_check_branch
      %27 = sbr.rel (0) target = $region29
    $region28: #{ffnn_forward.1} parent=1 // pred_region
      _
    $region29: #{ffnn_forward.1} parent=1 // pred_fallthru
      _
    // Predicated region
    $region30: #{ffnn_forward.1} parent=1 // pred_check
      _
    $region31: #{ffnn_forward.1} parent=1 // pred_check_branch
      %29 = sbr.rel (0) target = $region33
    $region32: #{ffnn_forward.1} parent=1 // pred_region
      _
    $region33: #{ffnn_forward.1} parent=1 // pred_fallthru
      _
    %v30 = vld [vmem:[%s0] sm:$0xff]
    %v31 = vld [vmem:[%s0 + $0x8] sm:$0xff]
    %v32 = vld [vmem:[%s0 + $0x10] sm:$0xff]
    %v33 = vld [vmem:[%s0 + $0x18] sm:$0xff]
    %v34 = vld [vmem:[%s0 + $0x20] sm:$0xff]
    %v35 = vld [vmem:[%s0 + $0x28] sm:$0xff]
    %v36 = vld [vmem:[%s0 + $0x30] sm:$0xff]
    %v37 = vld [vmem:[%s0 + $0x38] sm:$0xff]
    %v38 = vld [vmem:[%s0 + $0x40] sm:$0xff]
    %v39 = vld [vmem:[%s0 + $0x48] sm:$0xff]
    %v40 = vld [vmem:[%s0 + $0x50] sm:$0xff]
    %v41 = vld [vmem:[%s0 + $0x58] sm:$0xff]
    %v42 = vld [vmem:[%s1] sm:$0xff]
    %v43 = vld [vmem:[%s1 + $0x8] sm:$0xff]
    %v44 = vld [vmem:[%s1 + $0x10] sm:$0xff]
    %v45 = vld [vmem:[%s1 + $0x18] sm:$0xff]
    %v46 = vld [vmem:[%s1 + $0x20] sm:$0xff]
    %v47 = vld [vmem:[%s1 + $0x28] sm:$0xff]
    %v48 = vld [vmem:[%s1 + $0x30] sm:$0xff]
    %v49 = vld [vmem:[%s1 + $0x38] sm:$0xff]
    %v50 = vld [vmem:[%s1 + $0x40] sm:$0xff]
    %v51 = vld [vmem:[%s1 + $0x48] sm:$0xff]
    %v52 = vld [vmem:[%s1 + $0x50] sm:$0xff]
    %v53 = vld [vmem:[%s1 + $0x58] sm:$0xff]
    %v54 = vld [vmem:[%s1 + $0x60] sm:$0xff]
    %v55 = vld [vmem:[%s1 + $0x68] sm:$0xff]
    %v56 = vld [vmem:[%s1 + $0x70] sm:$0xff]
    %v57 = vld [vmem:[%s1 + $0x78] sm:$0xff]
    %v58 = vld [vmem:[%s1 + $0x80] sm:$0xff]
    %v59 = vld [vmem:[%s1 + $0x88] sm:$0xff]
    %v60 = vld [vmem:[%s1 + $0x90] sm:$0xff]
    %v61 = vld [vmem:[%s1 + $0x98] sm:$0xff]
    %v62 = vld [vmem:[%s1 + $0xa0] sm:$0xff]
    %v63 = vld [vmem:[%s1 + $0xa8] sm:$0xff]
    %v64 = vld [vmem:[%s1 + $0xb0] sm:$0xff]
    %v65 = vld [vmem:[%s1 + $0xb8] sm:$0xff]
    %v66 = vld [vmem:[%s1 + $0xc0] sm:$0xff]
    %v67 = vld [vmem:[%s1 + $0xc8] sm:$0xff]
    %v68 = vld [vmem:[%s1 + $0xd0] sm:$0xff]
    %v69 = vld [vmem:[%s1 + $0xd8] sm:$0xff]
    %v70 = vld [vmem:[%s1 + $0xe0] sm:$0xff]
    %v71 = vld [vmem:[%s1 + $0xe8] sm:$0xff]
    %v72 = vld [vmem:[%s1 + $0xf0] sm:$0xff]
    %v73 = vld [vmem:[%s1 + $0xf8] sm:$0xff]
    %v74 = vld [vmem:[%s1 + $0x100] sm:$0xff]
    %v75 = vld [vmem:[%s1 + $0x108] sm:$0xff]
    %v76 = vld [vmem:[%s1 + $0x110] sm:$0xff]
    %v77 = vld [vmem:[%s1 + $0x118] sm:$0xff]
    %v78 = vld [vmem:[%s1 + $0x120] sm:$0xff]
    %v79 = vld [vmem:[%s1 + $0x128] sm:$0xff]
    %v80 = vld [vmem:[%s1 + $0x130] sm:$0xff]
    %v81 = vld [vmem:[%s1 + $0x138] sm:$0xff]
    %v82 = vld [vmem:[%s1 + $0x140] sm:$0xff]
    %v83 = vld [vmem:[%s1 + $0x148] sm:$0xff]
    %v84 = vld [vmem:[%s1 + $0x150] sm:$0xff]
    %v85 = vld [vmem:[%s1 + $0x158] sm:$0xff]
    %v86 = vld [vmem:[%s1 + $0x160] sm:$0xff]
    %v87 = vld [vmem:[%s1 + $0x168] sm:$0xff]
    %v88 = vld [vmem:[%s1 + $0x170] sm:$0xff]
    %v89 = vld [vmem:[%s1 + $0x178] sm:$0xff]
    %v90 = vld [vmem:[%s1 + $0x180] sm:$0xff]
    %v91 = vld [vmem:[%s1 + $0x188] sm:$0xff]
    %v92 = vld [vmem:[%s1 + $0x190] sm:$0xff]
    %v93 = vld [vmem:[%s1 + $0x198] sm:$0xff]
    %v94 = vld [vmem:[%s1 + $0x1a0] sm:$0xff]
    %v95 = vld [vmem:[%s1 + $0x1a8] sm:$0xff]
    %v96 = vld [vmem:[%s1 + $0x1b0] sm:$0xff]
    %v97 = vld [vmem:[%s1 + $0x1b8] sm:$0xff]
    %v98 = vld [vmem:[%s1 + $0x1c0] sm:$0xff]
    %v99 = vld [vmem:[%s1 + $0x1c8] sm:$0xff]
    %v100 = vld [vmem:[%s1 + $0x1d0] sm:$0xff]
    %v101 = vld [vmem:[%s1 + $0x1d8] sm:$0xff]
    %v102 = vld [vmem:[%s1 + $0x1e0] sm:$0xff]
    %v103 = vld [vmem:[%s1 + $0x1e8] sm:$0xff]
    %v104 = vld [vmem:[%s1 + $0x1f0] sm:$0xff]
    %v105 = vld [vmem:[%s1 + $0x1f8] sm:$0xff]
    %v106 = vld [vmem:[%s1 + $0x200] sm:$0xff]
    %v107 = vld [vmem:[%s1 + $0x208] sm:$0xff]
    %v108 = vld [vmem:[%s1 + $0x210] sm:$0xff]
    %v109 = vld [vmem:[%s1 + $0x218] sm:$0xff]
    %v110 = vld [vmem:[%s1 + $0x220] sm:$0xff]
    %v111 = vld [vmem:[%s1 + $0x228] sm:$0xff]
    %v112 = vld [vmem:[%s1 + $0x230] sm:$0xff]
    %v113 = vld [vmem:[%s1 + $0x238] sm:$0xff]
    %v114 = vld [vmem:[%s1 + $0x240] sm:$0xff]
    %v115 = vld [vmem:[%s1 + $0x248] sm:$0xff]
    %v116 = vld [vmem:[%s1 + $0x250] sm:$0xff]
    %v117 = vld [vmem:[%s1 + $0x258] sm:$0xff]
    %v118 = vld [vmem:[%s1 + $0x260] sm:$0xff]
    %v119 = vld [vmem:[%s1 + $0x268] sm:$0xff]
    %v120 = vld [vmem:[%s1 + $0x270] sm:$0xff]
    %v121 = vld [vmem:[%s1 + $0x278] sm:$0xff]
    %v122 = vld [vmem:[%s1 + $0x280] sm:$0xff]
    %v123 = vld [vmem:[%s1 + $0x288] sm:$0xff]
    %v124 = vld [vmem:[%s1 + $0x290] sm:$0xff]
    %v125 = vld [vmem:[%s1 + $0x298] sm:$0xff]
    %v126 = vld [vmem:[%s1 + $0x2a0] sm:$0xff]
    %v127 = vld [vmem:[%s1 + $0x2a8] sm:$0xff]
    %v128 = vld [vmem:[%s1 + $0x2b0] sm:$0xff]
    %v129 = vld [vmem:[%s1 + $0x2b8] sm:$0xff]
    %v130 = vld [vmem:[%s1 + $0x2c0] sm:$0xff]
    %v131 = vld [vmem:[%s1 + $0x2c8] sm:$0xff]
    %v132 = vld [vmem:[%s1 + $0x2d0] sm:$0xff]
    %v133 = vld [vmem:[%s1 + $0x2d8] sm:$0xff]
    %v134 = vld [vmem:[%s1 + $0x2e0] sm:$0xff]
    %v135 = vld [vmem:[%s1 + $0x2e8] sm:$0xff]
    %v136 = vld [vmem:[%s1 + $0x2f0] sm:$0xff]
    %v137 = vld [vmem:[%s1 + $0x2f8] sm:$0xff]
    %v138 = vunpack.c.0.s8 %v42
    %v139 = vunpack.c.1.s8 %v42
    %v140 = vunpack.c.2.s8 %v42
    %v141 = vunpack.c.3.s8 %v42
    %v142 = vunpack.c.0.s8 %v43
    %v143 = vunpack.c.1.s8 %v43
    %v144 = vunpack.c.2.s8 %v43
    %v145 = vunpack.c.3.s8 %v43
    %v146 = vunpack.c.0.s8 %v44
    %v147 = vunpack.c.1.s8 %v44
    %v148 = vunpack.c.2.s8 %v44
    %v149 = vunpack.c.3.s8 %v44
    %v150 = vunpack.c.0.s8 %v45
    %v151 = vunpack.c.1.s8 %v45
    %v152 = vunpack.c.2.s8 %v45
    %v153 = vunpack.c.3.s8 %v45
    %v154 = vunpack.c.0.s8 %v46
    %v155 = vunpack.c.1.s8 %v46
    %v156 = vunpack.c.2.s8 %v46
    %v157 = vunpack.c.3.s8 %v46
    %v158 = vunpack.c.0.s8 %v47
    %v159 = vunpack.c.1.s8 %v47
    %v160 = vunpack.c.2.s8 %v47
    %v161 = vunpack.c.3.s8 %v47
    %v162 = vunpack.c.0.s8 %v48
    %v163 = vunpack.c.1.s8 %v48
    %v164 = vunpack.c.2.s8 %v48
    %v165 = vunpack.c.3.s8 %v48
    %v166 = vunpack.c.0.s8 %v49
    %v167 = vunpack.c.1.s8 %v49
    %v168 = vunpack.c.2.s8 %v49
    %v169 = vunpack.c.3.s8 %v49
    %v170 = vunpack.c.0.s8 %v50
    %v171 = vunpack.c.1.s8 %v50
    %v172 = vunpack.c.2.s8 %v50
    %v173 = vunpack.c.3.s8 %v50
    %v174 = vunpack.c.0.s8 %v51
    %v175 = vunpack.c.1.s8 %v51
    %v176 = vunpack.c.2.s8 %v51
    %v177 = vunpack.c.3.s8 %v51
    %v178 = vunpack.c.0.s8 %v52
    %v179 = vunpack.c.1.s8 %v52
    %v180 = vunpack.c.2.s8 %v52
    %v181 = vunpack.c.3.s8 %v52
    %v182 = vunpack.c.0.s8 %v53
    %v183 = vunpack.c.1.s8 %v53
    %v184 = vunpack.c.2.s8 %v53
    %v185 = vunpack.c.3.s8 %v53
    %v186 = vunpack.c.0.s8 %v54
    %v187 = vunpack.c.1.s8 %v54
    %v188 = vunpack.c.2.s8 %v54
    %v189 = vunpack.c.3.s8 %v54
    %v190 = vunpack.c.0.s8 %v55
    %v191 = vunpack.c.1.s8 %v55
    %v192 = vunpack.c.2.s8 %v55
    %v193 = vunpack.c.3.s8 %v55
    %v194 = vunpack.c.0.s8 %v56
    %v195 = vunpack.c.1.s8 %v56
    %v196 = vunpack.c.2.s8 %v56
    %v197 = vunpack.c.3.s8 %v56
    %v198 = vunpack.c.0.s8 %v57
    %v199 = vunpack.c.1.s8 %v57
    %v200 = vunpack.c.2.s8 %v57
    %v201 = vunpack.c.3.s8 %v57
    %v202 = vunpack.c.0.s8 %v58
    %v203 = vunpack.c.1.s8 %v58
    %v204 = vunpack.c.2.s8 %v58
    %v205 = vunpack.c.3.s8 %v58
    %v206 = vunpack.c.0.s8 %v59
    %v207 = vunpack.c.1.s8 %v59
    %v208 = vunpack.c.2.s8 %v59
    %v209 = vunpack.c.3.s8 %v59
    %v210 = vunpack.c.0.s8 %v60
    %v211 = vunpack.c.1.s8 %v60
    %v212 = vunpack.c.2.s8 %v60
    %v213 = vunpack.c.3.s8 %v60
    %v214 = vunpack.c.0.s8 %v61
    %v215 = vunpack.c.1.s8 %v61
    %v216 = vunpack.c.2.s8 %v61
    %v217 = vunpack.c.3.s8 %v61
    %v218 = vunpack.c.0.s8 %v62
    %v219 = vunpack.c.1.s8 %v62
    %v220 = vunpack.c.2.s8 %v62
    %v221 = vunpack.c.3.s8 %v62
    %v222 = vunpack.c.0.s8 %v63
    %v223 = vunpack.c.1.s8 %v63
    %v224 = vunpack.c.2.s8 %v63
    %v225 = vunpack.c.3.s8 %v63
    %v226 = vunpack.c.0.s8 %v64
    %v227 = vunpack.c.1.s8 %v64
    %v228 = vunpack.c.2.s8 %v64
    %v229 = vunpack.c.3.s8 %v64
    %v230 = vunpack.c.0.s8 %v65
    %v231 = vunpack.c.1.s8 %v65
    %v232 = vunpack.c.2.s8 %v65
    %v233 = vunpack.c.3.s8 %v65
    %v234 = vunpack.c.0.s8 %v66
    %v235 = vunpack.c.1.s8 %v66
    %v236 = vunpack.c.2.s8 %v66
    %v237 = vunpack.c.3.s8 %v66
    %v238 = vunpack.c.0.s8 %v67
    %v239 = vunpack.c.1.s8 %v67
    %v240 = vunpack.c.2.s8 %v67
    %v241 = vunpack.c.3.s8 %v67
    %v242 = vunpack.c.0.s8 %v68
    %v243 = vunpack.c.1.s8 %v68
    %v244 = vunpack.c.2.s8 %v68
    %v245 = vunpack.c.3.s8 %v68
    %v246 = vunpack.c.0.s8 %v69
    %v247 = vunpack.c.1.s8 %v69
    %v248 = vunpack.c.2.s8 %v69
    %v249 = vunpack.c.3.s8 %v69
    %v250 = vunpack.c.0.s8 %v70
    %v251 = vunpack.c.1.s8 %v70
    %v252 = vunpack.c.2.s8 %v70
    %v253 = vunpack.c.3.s8 %v70
    %v254 = vunpack.c.0.s8 %v71
    %v255 = vunpack.c.1.s8 %v71
    %v256 = vunpack.c.2.s8 %v71
    %v257 = vunpack.c.3.s8 %v71
    %v258 = vunpack.c.0.s8 %v72
    %v259 = vunpack.c.1.s8 %v72
    %v260 = vunpack.c.2.s8 %v72
    %v261 = vunpack.c.3.s8 %v72
    %v262 = vunpack.c.0.s8 %v73
    %v263 = vunpack.c.1.s8 %v73
    %v264 = vunpack.c.2.s8 %v73
    %v265 = vunpack.c.3.s8 %v73
    %v266 = vunpack.c.0.s8 %v74
    %v267 = vunpack.c.1.s8 %v74
    %v268 = vunpack.c.2.s8 %v74
    %v269 = vunpack.c.3.s8 %v74
    %v270 = vunpack.c.0.s8 %v75
    %v271 = vunpack.c.1.s8 %v75
    %v272 = vunpack.c.2.s8 %v75
    %v273 = vunpack.c.3.s8 %v75
    %v274 = vunpack.c.0.s8 %v76
    %v275 = vunpack.c.1.s8 %v76
    %v276 = vunpack.c.2.s8 %v76
    %v277 = vunpack.c.3.s8 %v76
    %v278 = vunpack.c.0.s8 %v77
    %v279 = vunpack.c.1.s8 %v77
    %v280 = vunpack.c.2.s8 %v77
    %v281 = vunpack.c.3.s8 %v77
    %v282 = vunpack.c.0.s8 %v78
    %v283 = vunpack.c.1.s8 %v78
    %v284 = vunpack.c.2.s8 %v78
    %v285 = vunpack.c.3.s8 %v78
    %v286 = vunpack.c.0.s8 %v79
    %v287 = vunpack.c.1.s8 %v79
    %v288 = vunpack.c.2.s8 %v79
    %v289 = vunpack.c.3.s8 %v79
    %v290 = vunpack.c.0.s8 %v80
    %v291 = vunpack.c.1.s8 %v80
    %v292 = vunpack.c.2.s8 %v80
    %v293 = vunpack.c.3.s8 %v80
    %v294 = vunpack.c.0.s8 %v81
    %v295 = vunpack.c.1.s8 %v81
    %v296 = vunpack.c.2.s8 %v81
    %v297 = vunpack.c.3.s8 %v81
    %v298 = vunpack.c.0.s8 %v82
    %v299 = vunpack.c.1.s8 %v82
    %v300 = vunpack.c.2.s8 %v82
    %v301 = vunpack.c.3.s8 %v82
    %v302 = vunpack.c.0.s8 %v83
    %v303 = vunpack.c.1.s8 %v83
    %v304 = vunpack.c.2.s8 %v83
    %v305 = vunpack.c.3.s8 %v83
    %v306 = vunpack.c.0.s8 %v84
    %v307 = vunpack.c.1.s8 %v84
    %v308 = vunpack.c.2.s8 %v84
    %v309 = vunpack.c.3.s8 %v84
    %v310 = vunpack.c.0.s8 %v85
    %v311 = vunpack.c.1.s8 %v85
    %v312 = vunpack.c.2.s8 %v85
    %v313 = vunpack.c.3.s8 %v85
    %v314 = vunpack.c.0.s8 %v86
    %v315 = vunpack.c.1.s8 %v86
    %v316 = vunpack.c.2.s8 %v86
    %v317 = vunpack.c.3.s8 %v86
    %v318 = vunpack.c.0.s8 %v87
    %v319 = vunpack.c.1.s8 %v87
    %v320 = vunpack.c.2.s8 %v87
    %v321 = vunpack.c.3.s8 %v87
    %v322 = vunpack.c.0.s8 %v88
    %v323 = vunpack.c.1.s8 %v88
    %v324 = vunpack.c.2.s8 %v88
    %v325 = vunpack.c.3.s8 %v88
    %v326 = vunpack.c.0.s8 %v89
    %v327 = vunpack.c.1.s8 %v89
    %v328 = vunpack.c.2.s8 %v89
    %v329 = vunpack.c.3.s8 %v89
    %v330 = vunpack.c.0.s8 %v90
    %v331 = vunpack.c.1.s8 %v90
    %v332 = vunpack.c.2.s8 %v90
    %v333 = vunpack.c.3.s8 %v90
    %v334 = vunpack.c.0.s8 %v91
    %v335 = vunpack.c.1.s8 %v91
    %v336 = vunpack.c.2.s8 %v91
    %v337 = vunpack.c.3.s8 %v91
    %v338 = vunpack.c.0.s8 %v92
    %v339 = vunpack.c.1.s8 %v92
    %v340 = vunpack.c.2.s8 %v92
    %v341 = vunpack.c.3.s8 %v92
    %v342 = vunpack.c.0.s8 %v93
    %v343 = vunpack.c.1.s8 %v93
    %v344 = vunpack.c.2.s8 %v93
    %v345 = vunpack.c.3.s8 %v93
    %v346 = vunpack.c.0.s8 %v94
    %v347 = vunpack.c.1.s8 %v94
    %v348 = vunpack.c.2.s8 %v94
    %v349 = vunpack.c.3.s8 %v94
    %v350 = vunpack.c.0.s8 %v95
    %v351 = vunpack.c.1.s8 %v95
    %v352 = vunpack.c.2.s8 %v95
    %v353 = vunpack.c.3.s8 %v95
    %v354 = vunpack.c.0.s8 %v96
    %v355 = vunpack.c.1.s8 %v96
    %v356 = vunpack.c.2.s8 %v96
    %v357 = vunpack.c.3.s8 %v96
    %v358 = vunpack.c.0.s8 %v97
    %v359 = vunpack.c.1.s8 %v97
    %v360 = vunpack.c.2.s8 %v97
    %v361 = vunpack.c.3.s8 %v97
    %v362 = vunpack.c.0.s8 %v98
    %v363 = vunpack.c.1.s8 %v98
    %v364 = vunpack.c.2.s8 %v98
    %v365 = vunpack.c.3.s8 %v98
    %v366 = vunpack.c.0.s8 %v99
    %v367 = vunpack.c.1.s8 %v99
    %v368 = vunpack.c.2.s8 %v99
    %v369 = vunpack.c.3.s8 %v99
    %v370 = vunpack.c.0.s8 %v100
    %v371 = vunpack.c.1.s8 %v100
    %v372 = vunpack.c.2.s8 %v100
    %v373 = vunpack.c.3.s8 %v100
    %v374 = vunpack.c.0.s8 %v101
    %v375 = vunpack.c.1.s8 %v101
    %v376 = vunpack.c.2.s8 %v101
    %v377 = vunpack.c.3.s8 %v101
    %v378 = vunpack.c.0.s8 %v102
    %v379 = vunpack.c.1.s8 %v102
    %v380 = vunpack.c.2.s8 %v102
    %v381 = vunpack.c.3.s8 %v102
    %v382 = vunpack.c.0.s8 %v103
    %v383 = vunpack.c.1.s8 %v103
    %v384 = vunpack.c.2.s8 %v103
    %v385 = vunpack.c.3.s8 %v103
    %v386 = vunpack.c.0.s8 %v104
    %v387 = vunpack.c.1.s8 %v104
    %v388 = vunpack.c.2.s8 %v104
    %v389 = vunpack.c.3.s8 %v104
    %v390 = vunpack.c.0.s8 %v105
    %v391 = vunpack.c.1.s8 %v105
    %v392 = vunpack.c.2.s8 %v105
    %v393 = vunpack.c.3.s8 %v105
    %v394 = vunpack.c.0.s8 %v106
    %v395 = vunpack.c.1.s8 %v106
    %v396 = vunpack.c.2.s8 %v106
    %v397 = vunpack.c.3.s8 %v106
    %v398 = vunpack.c.0.s8 %v107
    %v399 = vunpack.c.1.s8 %v107
    %v400 = vunpack.c.2.s8 %v107
    %v401 = vunpack.c.3.s8 %v107
    %v402 = vunpack.c.0.s8 %v108
    %v403 = vunpack.c.1.s8 %v108
    %v404 = vunpack.c.2.s8 %v108
    %v405 = vunpack.c.3.s8 %v108
    %v406 = vunpack.c.0.s8 %v109
    %v407 = vunpack.c.1.s8 %v109
    %v408 = vunpack.c.2.s8 %v109
    %v409 = vunpack.c.3.s8 %v109
    %v410 = vunpack.c.0.s8 %v110
    %v411 = vunpack.c.1.s8 %v110
    %v412 = vunpack.c.2.s8 %v110
    %v413 = vunpack.c.3.s8 %v110
    %v414 = vunpack.c.0.s8 %v111
    %v415 = vunpack.c.1.s8 %v111
    %v416 = vunpack.c.2.s8 %v111
    %v417 = vunpack.c.3.s8 %v111
    %v418 = vunpack.c.0.s8 %v112
    %v419 = vunpack.c.1.s8 %v112
    %v420 = vunpack.c.2.s8 %v112
    %v421 = vunpack.c.3.s8 %v112
    %v422 = vunpack.c.0.s8 %v113
    %v423 = vunpack.c.1.s8 %v113
    %v424 = vunpack.c.2.s8 %v113
    %v425 = vunpack.c.3.s8 %v113
    %v426 = vunpack.c.0.s8 %v114
    %v427 = vunpack.c.1.s8 %v114
    %v428 = vunpack.c.2.s8 %v114
    %v429 = vunpack.c.3.s8 %v114
    %v430 = vunpack.c.0.s8 %v115
    %v431 = vunpack.c.1.s8 %v115
    %v432 = vunpack.c.2.s8 %v115
    %v433 = vunpack.c.3.s8 %v115
    %v434 = vunpack.c.0.s8 %v116
    %v435 = vunpack.c.1.s8 %v116
    %v436 = vunpack.c.2.s8 %v116
    %v437 = vunpack.c.3.s8 %v116
    %v438 = vunpack.c.0.s8 %v117
    %v439 = vunpack.c.1.s8 %v117
    %v440 = vunpack.c.2.s8 %v117
    %v441 = vunpack.c.3.s8 %v117
    %v442 = vunpack.c.0.s8 %v118
    %v443 = vunpack.c.1.s8 %v118
    %v444 = vunpack.c.2.s8 %v118
    %v445 = vunpack.c.3.s8 %v118
    %v446 = vunpack.c.0.s8 %v119
    %v447 = vunpack.c.1.s8 %v119
    %v448 = vunpack.c.2.s8 %v119
    %v449 = vunpack.c.3.s8 %v119
    %v450 = vunpack.c.0.s8 %v120
    %v451 = vunpack.c.1.s8 %v120
    %v452 = vunpack.c.2.s8 %v120
    %v453 = vunpack.c.3.s8 %v120
    %v454 = vunpack.c.0.s8 %v121
    %v455 = vunpack.c.1.s8 %v121
    %v456 = vunpack.c.2.s8 %v121
    %v457 = vunpack.c.3.s8 %v121
    %v458 = vunpack.c.0.s8 %v122
    %v459 = vunpack.c.1.s8 %v122
    %v460 = vunpack.c.2.s8 %v122
    %v461 = vunpack.c.3.s8 %v122
    %v462 = vunpack.c.0.s8 %v123
    %v463 = vunpack.c.1.s8 %v123
    %v464 = vunpack.c.2.s8 %v123
    %v465 = vunpack.c.3.s8 %v123
    %v466 = vunpack.c.0.s8 %v124
    %v467 = vunpack.c.1.s8 %v124
    %v468 = vunpack.c.2.s8 %v124
    %v469 = vunpack.c.3.s8 %v124
    %v470 = vunpack.c.0.s8 %v125
    %v471 = vunpack.c.1.s8 %v125
    %v472 = vunpack.c.2.s8 %v125
    %v473 = vunpack.c.3.s8 %v125
    %v474 = vunpack.c.0.s8 %v126
    %v475 = vunpack.c.1.s8 %v126
    %v476 = vunpack.c.2.s8 %v126
    %v477 = vunpack.c.3.s8 %v126
    %v478 = vunpack.c.0.s8 %v127
    %v479 = vunpack.c.1.s8 %v127
    %v480 = vunpack.c.2.s8 %v127
    %v481 = vunpack.c.3.s8 %v127
    %v482 = vunpack.c.0.s8 %v128
    %v483 = vunpack.c.1.s8 %v128
    %v484 = vunpack.c.2.s8 %v128
    %v485 = vunpack.c.3.s8 %v128
    %v486 = vunpack.c.0.s8 %v129
    %v487 = vunpack.c.1.s8 %v129
    %v488 = vunpack.c.2.s8 %v129
    %v489 = vunpack.c.3.s8 %v129
    %v490 = vunpack.c.0.s8 %v130
    %v491 = vunpack.c.1.s8 %v130
    %v492 = vunpack.c.2.s8 %v130
    %v493 = vunpack.c.3.s8 %v130
    %v494 = vunpack.c.0.s8 %v131
    %v495 = vunpack.c.1.s8 %v131
    %v496 = vunpack.c.2.s8 %v131
    %v497 = vunpack.c.3.s8 %v131
    %v498 = vunpack.c.0.s8 %v132
    %v499 = vunpack.c.1.s8 %v132
    %v500 = vunpack.c.2.s8 %v132
    %v501 = vunpack.c.3.s8 %v132
    %v502 = vunpack.c.0.s8 %v133
    %v503 = vunpack.c.1.s8 %v133
    %v504 = vunpack.c.2.s8 %v133
    %v505 = vunpack.c.3.s8 %v133
    %v506 = vunpack.c.0.s8 %v134
    %v507 = vunpack.c.1.s8 %v134
    %v508 = vunpack.c.2.s8 %v134
    %v509 = vunpack.c.3.s8 %v134
    %v510 = vunpack.c.0.s8 %v135
    %v511 = vunpack.c.1.s8 %v135
    %v512 = vunpack.c.2.s8 %v135
    %v513 = vunpack.c.3.s8 %v135
    %v514 = vunpack.c.0.s8 %v136
    %v515 = vunpack.c.1.s8 %v136
    %v516 = vunpack.c.2.s8 %v136
    %v517 = vunpack.c.3.s8 %v136
    %v518 = vunpack.c.0.s8 %v137
    %v519 = vunpack.c.1.s8 %v137
    %v520 = vunpack.c.2.s8 %v137
    %v521 = vunpack.c.3.s8 %v137
    %v522 = vcvt.s32.f32 %v138
    %v523 = vcvt.s32.f32 %v139
    %v524 = vcvt.s32.f32 %v140
    %v525 = vcvt.s32.f32 %v141
    %v526 = vcvt.s32.f32 %v142
    %v527 = vcvt.s32.f32 %v143
    %v528 = vcvt.s32.f32 %v144
    %v529 = vcvt.s32.f32 %v145
    %v530 = vcvt.s32.f32 %v146
    %v531 = vcvt.s32.f32 %v147
    %v532 = vcvt.s32.f32 %v148
    %v533 = vcvt.s32.f32 %v149
    %v534 = vcvt.s32.f32 %v150
    %v535 = vcvt.s32.f32 %v151
    %v536 = vcvt.s32.f32 %v152
    %v537 = vcvt.s32.f32 %v153
    %v538 = vcvt.s32.f32 %v154
    %v539 = vcvt.s32.f32 %v155
    %v540 = vcvt.s32.f32 %v156
    %v541 = vcvt.s32.f32 %v157
    %v542 = vcvt.s32.f32 %v158
    %v543 = vcvt.s32.f32 %v159
    %v544 = vcvt.s32.f32 %v160
    %v545 = vcvt.s32.f32 %v161
    %v546 = vcvt.s32.f32 %v162
    %v547 = vcvt.s32.f32 %v163
    %v548 = vcvt.s32.f32 %v164
    %v549 = vcvt.s32.f32 %v165
    %v550 = vcvt.s32.f32 %v166
    %v551 = vcvt.s32.f32 %v167
    %v552 = vcvt.s32.f32 %v168
    %v553 = vcvt.s32.f32 %v169
    %v554 = vcvt.s32.f32 %v170
    %v555 = vcvt.s32.f32 %v171
    %v556 = vcvt.s32.f32 %v172
    %v557 = vcvt.s32.f32 %v173
    %v558 = vcvt.s32.f32 %v174
    %v559 = vcvt.s32.f32 %v175
    %v560 = vcvt.s32.f32 %v176
    %v561 = vcvt.s32.f32 %v177
    %v562 = vcvt.s32.f32 %v178
    %v563 = vcvt.s32.f32 %v179
    %v564 = vcvt.s32.f32 %v180
    %v565 = vcvt.s32.f32 %v181
    %v566 = vcvt.s32.f32 %v182
    %v567 = vcvt.s32.f32 %v183
    %v568 = vcvt.s32.f32 %v184
    %v569 = vcvt.s32.f32 %v185
    %v570 = vcvt.s32.f32 %v186
    %v571 = vcvt.s32.f32 %v187
    %v572 = vcvt.s32.f32 %v188
    %v573 = vcvt.s32.f32 %v189
    %v574 = vcvt.s32.f32 %v190
    %v575 = vcvt.s32.f32 %v191
    %v576 = vcvt.s32.f32 %v192
    %v577 = vcvt.s32.f32 %v193
    %v578 = vcvt.s32.f32 %v194
    %v579 = vcvt.s32.f32 %v195
    %v580 = vcvt.s32.f32 %v196
    %v581 = vcvt.s32.f32 %v197
    %v582 = vcvt.s32.f32 %v198
    %v583 = vcvt.s32.f32 %v199
    %v584 = vcvt.s32.f32 %v200
    %v585 = vcvt.s32.f32 %v201
    %v586 = vcvt.s32.f32 %v202
    %v587 = vcvt.s32.f32 %v203
    %v588 = vcvt.s32.f32 %v204
    %v589 = vcvt.s32.f32 %v205
    %v590 = vcvt.s32.f32 %v206
    %v591 = vcvt.s32.f32 %v207
    %v592 = vcvt.s32.f32 %v208
    %v593 = vcvt.s32.f32 %v209
    %v594 = vcvt.s32.f32 %v210
    %v595 = vcvt.s32.f32 %v211
    %v596 = vcvt.s32.f32 %v212
    %v597 = vcvt.s32.f32 %v213
    %v598 = vcvt.s32.f32 %v214
    %v599 = vcvt.s32.f32 %v215
    %v600 = vcvt.s32.f32 %v216
    %v601 = vcvt.s32.f32 %v217
    %v602 = vcvt.s32.f32 %v218
    %v603 = vcvt.s32.f32 %v219
    %v604 = vcvt.s32.f32 %v220
    %v605 = vcvt.s32.f32 %v221
    %v606 = vcvt.s32.f32 %v222
    %v607 = vcvt.s32.f32 %v223
    %v608 = vcvt.s32.f32 %v224
    %v609 = vcvt.s32.f32 %v225
    %v610 = vcvt.s32.f32 %v226
    %v611 = vcvt.s32.f32 %v227
    %v612 = vcvt.s32.f32 %v228
    %v613 = vcvt.s32.f32 %v229
    %v614 = vcvt.s32.f32 %v230
    %v615 = vcvt.s32.f32 %v231
    %v616 = vcvt.s32.f32 %v232
    %v617 = vcvt.s32.f32 %v233
    %v618 = vcvt.s32.f32 %v234
    %v619 = vcvt.s32.f32 %v235
    %v620 = vcvt.s32.f32 %v236
    %v621 = vcvt.s32.f32 %v237
    %v622 = vcvt.s32.f32 %v238
    %v623 = vcvt.s32.f32 %v239
    %v624 = vcvt.s32.f32 %v240
    %v625 = vcvt.s32.f32 %v241
    %v626 = vcvt.s32.f32 %v242
    %v627 = vcvt.s32.f32 %v243
    %v628 = vcvt.s32.f32 %v244
    %v629 = vcvt.s32.f32 %v245
    %v630 = vcvt.s32.f32 %v246
    %v631 = vcvt.s32.f32 %v247
    %v632 = vcvt.s32.f32 %v248
    %v633 = vcvt.s32.f32 %v249
    %v634 = vcvt.s32.f32 %v250
    %v635 = vcvt.s32.f32 %v251
    %v636 = vcvt.s32.f32 %v252
    %v637 = vcvt.s32.f32 %v253
    %v638 = vcvt.s32.f32 %v254
    %v639 = vcvt.s32.f32 %v255
    %v640 = vcvt.s32.f32 %v256
    %v641 = vcvt.s32.f32 %v257
    %v642 = vcvt.s32.f32 %v258
    %v643 = vcvt.s32.f32 %v259
    %v644 = vcvt.s32.f32 %v260
    %v645 = vcvt.s32.f32 %v261
    %v646 = vcvt.s32.f32 %v262
    %v647 = vcvt.s32.f32 %v263
    %v648 = vcvt.s32.f32 %v264
    %v649 = vcvt.s32.f32 %v265
    %v650 = vcvt.s32.f32 %v266
    %v651 = vcvt.s32.f32 %v267
    %v652 = vcvt.s32.f32 %v268
    %v653 = vcvt.s32.f32 %v269
    %v654 = vcvt.s32.f32 %v270
    %v655 = vcvt.s32.f32 %v271
    %v656 = vcvt.s32.f32 %v272
    %v657 = vcvt.s32.f32 %v273
    %v658 = vcvt.s32.f32 %v274
    %v659 = vcvt.s32.f32 %v275
    %v660 = vcvt.s32.f32 %v276
    %v661 = vcvt.s32.f32 %v277
    %v662 = vcvt.s32.f32 %v278
    %v663 = vcvt.s32.f32 %v279
    %v664 = vcvt.s32.f32 %v280
    %v665 = vcvt.s32.f32 %v281
    %v666 = vcvt.s32.f32 %v282
    %v667 = vcvt.s32.f32 %v283
    %v668 = vcvt.s32.f32 %v284
    %v669 = vcvt.s32.f32 %v285
    %v670 = vcvt.s32.f32 %v286
    %v671 = vcvt.s32.f32 %v287
    %v672 = vcvt.s32.f32 %v288
    %v673 = vcvt.s32.f32 %v289
    %v674 = vcvt.s32.f32 %v290
    %v675 = vcvt.s32.f32 %v291
    %v676 = vcvt.s32.f32 %v292
    %v677 = vcvt.s32.f32 %v293
    %v678 = vcvt.s32.f32 %v294
    %v679 = vcvt.s32.f32 %v295
    %v680 = vcvt.s32.f32 %v296
    %v681 = vcvt.s32.f32 %v297
    %v682 = vcvt.s32.f32 %v298
    %v683 = vcvt.s32.f32 %v299
    %v684 = vcvt.s32.f32 %v300
    %v685 = vcvt.s32.f32 %v301
    %v686 = vcvt.s32.f32 %v302
    %v687 = vcvt.s32.f32 %v303
    %v688 = vcvt.s32.f32 %v304
    %v689 = vcvt.s32.f32 %v305
    %v690 = vcvt.s32.f32 %v306
    %v691 = vcvt.s32.f32 %v307
    %v692 = vcvt.s32.f32 %v308
    %v693 = vcvt.s32.f32 %v309
    %v694 = vcvt.s32.f32 %v310
    %v695 = vcvt.s32.f32 %v311
    %v696 = vcvt.s32.f32 %v312
    %v697 = vcvt.s32.f32 %v313
    %v698 = vcvt.s32.f32 %v314
    %v699 = vcvt.s32.f32 %v315
    %v700 = vcvt.s32.f32 %v316
    %v701 = vcvt.s32.f32 %v317
    %v702 = vcvt.s32.f32 %v318
    %v703 = vcvt.s32.f32 %v319
    %v704 = vcvt.s32.f32 %v320
    %v705 = vcvt.s32.f32 %v321
    %v706 = vcvt.s32.f32 %v322
    %v707 = vcvt.s32.f32 %v323
    %v708 = vcvt.s32.f32 %v324
    %v709 = vcvt.s32.f32 %v325
    %v710 = vcvt.s32.f32 %v326
    %v711 = vcvt.s32.f32 %v327
    %v712 = vcvt.s32.f32 %v328
    %v713 = vcvt.s32.f32 %v329
    %v714 = vcvt.s32.f32 %v330
    %v715 = vcvt.s32.f32 %v331
    %v716 = vcvt.s32.f32 %v332
    %v717 = vcvt.s32.f32 %v333
    %v718 = vcvt.s32.f32 %v334
    %v719 = vcvt.s32.f32 %v335
    %v720 = vcvt.s32.f32 %v336
    %v721 = vcvt.s32.f32 %v337
    %v722 = vcvt.s32.f32 %v338
    %v723 = vcvt.s32.f32 %v339
    %v724 = vcvt.s32.f32 %v340
    %v725 = vcvt.s32.f32 %v341
    %v726 = vcvt.s32.f32 %v342
    %v727 = vcvt.s32.f32 %v343
    %v728 = vcvt.s32.f32 %v344
    %v729 = vcvt.s32.f32 %v345
    %v730 = vcvt.s32.f32 %v346
    %v731 = vcvt.s32.f32 %v347
    %v732 = vcvt.s32.f32 %v348
    %v733 = vcvt.s32.f32 %v349
    %v734 = vcvt.s32.f32 %v350
    %v735 = vcvt.s32.f32 %v351
    %v736 = vcvt.s32.f32 %v352
    %v737 = vcvt.s32.f32 %v353
    %v738 = vcvt.s32.f32 %v354
    %v739 = vcvt.s32.f32 %v355
    %v740 = vcvt.s32.f32 %v356
    %v741 = vcvt.s32.f32 %v357
    %v742 = vcvt.s32.f32 %v358
    %v743 = vcvt.s32.f32 %v359
    %v744 = vcvt.s32.f32 %v360
    %v745 = vcvt.s32.f32 %v361
    %v746 = vcvt.s32.f32 %v362
    %v747 = vcvt.s32.f32 %v363
    %v748 = vcvt.s32.f32 %v364
    %v749 = vcvt.s32.f32 %v365
    %v750 = vcvt.s32.f32 %v366
    %v751 = vcvt.s32.f32 %v367
    %v752 = vcvt.s32.f32 %v368
    %v753 = vcvt.s32.f32 %v369
    %v754 = vcvt.s32.f32 %v370
    %v755 = vcvt.s32.f32 %v371
    %v756 = vcvt.s32.f32 %v372
    %v757 = vcvt.s32.f32 %v373
    %v758 = vcvt.s32.f32 %v374
    %v759 = vcvt.s32.f32 %v375
    %v760 = vcvt.s32.f32 %v376
    %v761 = vcvt.s32.f32 %v377
    %v762 = vcvt.s32.f32 %v378
    %v763 = vcvt.s32.f32 %v379
    %v764 = vcvt.s32.f32 %v380
    %v765 = vcvt.s32.f32 %v381
    %v766 = vcvt.s32.f32 %v382
    %v767 = vcvt.s32.f32 %v383
    %v768 = vcvt.s32.f32 %v384
    %v769 = vcvt.s32.f32 %v385
    %v770 = vcvt.s32.f32 %v386
    %v771 = vcvt.s32.f32 %v387
    %v772 = vcvt.s32.f32 %v388
    %v773 = vcvt.s32.f32 %v389
    %v774 = vcvt.s32.f32 %v390
    %v775 = vcvt.s32.f32 %v391
    %v776 = vcvt.s32.f32 %v392
    %v777 = vcvt.s32.f32 %v393
    %v778 = vcvt.s32.f32 %v394
    %v779 = vcvt.s32.f32 %v395
    %v780 = vcvt.s32.f32 %v396
    %v781 = vcvt.s32.f32 %v397
    %v782 = vcvt.s32.f32 %v398
    %v783 = vcvt.s32.f32 %v399
    %v784 = vcvt.s32.f32 %v400
    %v785 = vcvt.s32.f32 %v401
    %v786 = vcvt.s32.f32 %v402
    %v787 = vcvt.s32.f32 %v403
    %v788 = vcvt.s32.f32 %v404
    %v789 = vcvt.s32.f32 %v405
    %v790 = vcvt.s32.f32 %v406
    %v791 = vcvt.s32.f32 %v407
    %v792 = vcvt.s32.f32 %v408
    %v793 = vcvt.s32.f32 %v409
    %v794 = vcvt.s32.f32 %v410
    %v795 = vcvt.s32.f32 %v411
    %v796 = vcvt.s32.f32 %v412
    %v797 = vcvt.s32.f32 %v413
    %v798 = vcvt.s32.f32 %v414
    %v799 = vcvt.s32.f32 %v415
    %v800 = vcvt.s32.f32 %v416
    %v801 = vcvt.s32.f32 %v417
    %v802 = vcvt.s32.f32 %v418
    %v803 = vcvt.s32.f32 %v419
    %v804 = vcvt.s32.f32 %v420
    %v805 = vcvt.s32.f32 %v421
    %v806 = vcvt.s32.f32 %v422
    %v807 = vcvt.s32.f32 %v423
    %v808 = vcvt.s32.f32 %v424
    %v809 = vcvt.s32.f32 %v425
    %v810 = vcvt.s32.f32 %v426
    %v811 = vcvt.s32.f32 %v427
    %v812 = vcvt.s32.f32 %v428
    %v813 = vcvt.s32.f32 %v429
    %v814 = vcvt.s32.f32 %v430
    %v815 = vcvt.s32.f32 %v431
    %v816 = vcvt.s32.f32 %v432
    %v817 = vcvt.s32.f32 %v433
    %v818 = vcvt.s32.f32 %v434
    %v819 = vcvt.s32.f32 %v435
    %v820 = vcvt.s32.f32 %v436
    %v821 = vcvt.s32.f32 %v437
    %v822 = vcvt.s32.f32 %v438
    %v823 = vcvt.s32.f32 %v439
    %v824 = vcvt.s32.f32 %v440
    %v825 = vcvt.s32.f32 %v441
    %v826 = vcvt.s32.f32 %v442
    %v827 = vcvt.s32.f32 %v443
    %v828 = vcvt.s32.f32 %v444
    %v829 = vcvt.s32.f32 %v445
    %v830 = vcvt.s32.f32 %v446
    %v831 = vcvt.s32.f32 %v447
    %v832 = vcvt.s32.f32 %v448
    %v833 = vcvt.s32.f32 %v449
    %v834 = vcvt.s32.f32 %v450
    %v835 = vcvt.s32.f32 %v451
    %v836 = vcvt.s32.f32 %v452
    %v837 = vcvt.s32.f32 %v453
    %v838 = vcvt.s32.f32 %v454
    %v839 = vcvt.s32.f32 %v455
    %v840 = vcvt.s32.f32 %v456
    %v841 = vcvt.s32.f32 %v457
    %v842 = vcvt.s32.f32 %v458
    %v843 = vcvt.s32.f32 %v459
    %v844 = vcvt.s32.f32 %v460
    %v845 = vcvt.s32.f32 %v461
    %v846 = vcvt.s32.f32 %v462
    %v847 = vcvt.s32.f32 %v463
    %v848 = vcvt.s32.f32 %v464
    %v849 = vcvt.s32.f32 %v465
    %v850 = vcvt.s32.f32 %v466
    %v851 = vcvt.s32.f32 %v467
    %v852 = vcvt.s32.f32 %v468
    %v853 = vcvt.s32.f32 %v469
    %v854 = vcvt.s32.f32 %v470
    %v855 = vcvt.s32.f32 %v471
    %v856 = vcvt.s32.f32 %v472
    %v857 = vcvt.s32.f32 %v473
    %v858 = vcvt.s32.f32 %v474
    %v859 = vcvt.s32.f32 %v475
    %v860 = vcvt.s32.f32 %v476
    %v861 = vcvt.s32.f32 %v477
    %v862 = vcvt.s32.f32 %v478
    %v863 = vcvt.s32.f32 %v479
    %v864 = vcvt.s32.f32 %v480
    %v865 = vcvt.s32.f32 %v481
    %v866 = vcvt.s32.f32 %v482
    %v867 = vcvt.s32.f32 %v483
    %v868 = vcvt.s32.f32 %v484
    %v869 = vcvt.s32.f32 %v485
    %v870 = vcvt.s32.f32 %v486
    %v871 = vcvt.s32.f32 %v487
    %v872 = vcvt.s32.f32 %v488
    %v873 = vcvt.s32.f32 %v489
    %v874 = vcvt.s32.f32 %v490
    %v875 = vcvt.s32.f32 %v491
    %v876 = vcvt.s32.f32 %v492
    %v877 = vcvt.s32.f32 %v493
    %v878 = vcvt.s32.f32 %v494
    %v879 = vcvt.s32.f32 %v495
    %v880 = vcvt.s32.f32 %v496
    %v881 = vcvt.s32.f32 %v497
    %v882 = vcvt.s32.f32 %v498
    %v883 = vcvt.s32.f32 %v499
    %v884 = vcvt.s32.f32 %v500
    %v885 = vcvt.s32.f32 %v501
    %v886 = vcvt.s32.f32 %v502
    %v887 = vcvt.s32.f32 %v503
    %v888 = vcvt.s32.f32 %v504
    %v889 = vcvt.s32.f32 %v505
    %v890 = vcvt.s32.f32 %v506
    %v891 = vcvt.s32.f32 %v507
    %v892 = vcvt.s32.f32 %v508
    %v893 = vcvt.s32.f32 %v509
    %v894 = vcvt.s32.f32 %v510
    %v895 = vcvt.s32.f32 %v511
    %v896 = vcvt.s32.f32 %v512
    %v897 = vcvt.s32.f32 %v513
    %v898 = vcvt.s32.f32 %v514
    %v899 = vcvt.s32.f32 %v515
    %v900 = vcvt.s32.f32 %v516
    %v901 = vcvt.s32.f32 %v517
    %v902 = vcvt.s32.f32 %v518
    %v903 = vcvt.s32.f32 %v519
    %v904 = vcvt.s32.f32 %v520
    %v905 = vcvt.s32.f32 %v521
    %v906 = vpack.c.bf16 %v523, %v522
    %v907 = vpack.c.bf16 %v525, %v524
    %v908 = vpack.c.bf16 %v527, %v526
    %v909 = vpack.c.bf16 %v529, %v528
    %v910 = vpack.c.bf16 %v531, %v530
    %v911 = vpack.c.bf16 %v533, %v532
    %v912 = vpack.c.bf16 %v535, %v534
    %v913 = vpack.c.bf16 %v537, %v536
    %v914 = vpack.c.bf16 %v539, %v538
    %v915 = vpack.c.bf16 %v541, %v540
    %v916 = vpack.c.bf16 %v543, %v542
    %v917 = vpack.c.bf16 %v545, %v544
    %v918 = vpack.c.bf16 %v547, %v546
    %v919 = vpack.c.bf16 %v549, %v548
    %v920 = vpack.c.bf16 %v551, %v550
    %v921 = vpack.c.bf16 %v553, %v552
    %v922 = vpack.c.bf16 %v555, %v554
    %v923 = vpack.c.bf16 %v557, %v556
    %v924 = vpack.c.bf16 %v559, %v558
    %v925 = vpack.c.bf16 %v561, %v560
    %v926 = vpack.c.bf16 %v563, %v562
    %v927 = vpack.c.bf16 %v565, %v564
    %v928 = vpack.c.bf16 %v567, %v566
    %v929 = vpack.c.bf16 %v569, %v568
    %v930 = vpack.c.bf16 %v571, %v570
    %v931 = vpack.c.bf16 %v573, %v572
    %v932 = vpack.c.bf16 %v575, %v574
    %v933 = vpack.c.bf16 %v577, %v576
    %v934 = vpack.c.bf16 %v579, %v578
    %v935 = vpack.c.bf16 %v581, %v580
    %v936 = vpack.c.bf16 %v583, %v582
    %v937 = vpack.c.bf16 %v585, %v584
    %v938 = vpack.c.bf16 %v587, %v586
    %v939 = vpack.c.bf16 %v589, %v588
    %v940 = vpack.c.bf16 %v591, %v590
    %v941 = vpack.c.bf16 %v593, %v592
    %v942 = vpack.c.bf16 %v595, %v594
    %v943 = vpack.c.bf16 %v597, %v596
    %v944 = vpack.c.bf16 %v599, %v598
    %v945 = vpack.c.bf16 %v601, %v600
    %v946 = vpack.c.bf16 %v603, %v602
    %v947 = vpack.c.bf16 %v605, %v604
    %v948 = vpack.c.bf16 %v607, %v606
    %v949 = vpack.c.bf16 %v609, %v608
    %v950 = vpack.c.bf16 %v611, %v610
    %v951 = vpack.c.bf16 %v613, %v612
    %v952 = vpack.c.bf16 %v615, %v614
    %v953 = vpack.c.bf16 %v617, %v616
    %v954 = vpack.c.bf16 %v619, %v618
    %v955 = vpack.c.bf16 %v621, %v620
    %v956 = vpack.c.bf16 %v623, %v622
    %v957 = vpack.c.bf16 %v625, %v624
    %v958 = vpack.c.bf16 %v627, %v626
    %v959 = vpack.c.bf16 %v629, %v628
    %v960 = vpack.c.bf16 %v631, %v630
    %v961 = vpack.c.bf16 %v633, %v632
    %v962 = vpack.c.bf16 %v635, %v634
    %v963 = vpack.c.bf16 %v637, %v636
    %v964 = vpack.c.bf16 %v639, %v638
    %v965 = vpack.c.bf16 %v641, %v640
    %v966 = vpack.c.bf16 %v643, %v642
    %v967 = vpack.c.bf16 %v645, %v644
    %v968 = vpack.c.bf16 %v647, %v646
    %v969 = vpack.c.bf16 %v649, %v648
    %v970 = vpack.c.bf16 %v651, %v650
    %v971 = vpack.c.bf16 %v653, %v652
    %v972 = vpack.c.bf16 %v655, %v654
    %v973 = vpack.c.bf16 %v657, %v656
    %v974 = vpack.c.bf16 %v659, %v658
    %v975 = vpack.c.bf16 %v661, %v660
    %v976 = vpack.c.bf16 %v663, %v662
    %v977 = vpack.c.bf16 %v665, %v664
    %v978 = vpack.c.bf16 %v667, %v666
    %v979 = vpack.c.bf16 %v669, %v668
    %v980 = vpack.c.bf16 %v671, %v670
    %v981 = vpack.c.bf16 %v673, %v672
    %v982 = vpack.c.bf16 %v675, %v674
    %v983 = vpack.c.bf16 %v677, %v676
    %v984 = vpack.c.bf16 %v679, %v678
    %v985 = vpack.c.bf16 %v681, %v680
    %v986 = vpack.c.bf16 %v683, %v682
    %v987 = vpack.c.bf16 %v685, %v684
    %v988 = vpack.c.bf16 %v687, %v686
    %v989 = vpack.c.bf16 %v689, %v688
    %v990 = vpack.c.bf16 %v691, %v690
    %v991 = vpack.c.bf16 %v693, %v692
    %v992 = vpack.c.bf16 %v695, %v694
    %v993 = vpack.c.bf16 %v697, %v696
    %v994 = vpack.c.bf16 %v699, %v698
    %v995 = vpack.c.bf16 %v701, %v700
    %v996 = vpack.c.bf16 %v703, %v702
    %v997 = vpack.c.bf16 %v705, %v704
    %v998 = vpack.c.bf16 %v707, %v706
    %v999 = vpack.c.bf16 %v709, %v708
    %v1000 = vpack.c.bf16 %v711, %v710
    %v1001 = vpack.c.bf16 %v713, %v712
    %v1002 = vpack.c.bf16 %v715, %v714
    %v1003 = vpack.c.bf16 %v717, %v716
    %v1004 = vpack.c.bf16 %v719, %v718
    %v1005 = vpack.c.bf16 %v721, %v720
    %v1006 = vpack.c.bf16 %v723, %v722
    %v1007 = vpack.c.bf16 %v725, %v724
    %v1008 = vpack.c.bf16 %v727, %v726
    %v1009 = vpack.c.bf16 %v729, %v728
    %v1010 = vpack.c.bf16 %v731, %v730
    %v1011 = vpack.c.bf16 %v733, %v732
    %v1012 = vpack.c.bf16 %v735, %v734
    %v1013 = vpack.c.bf16 %v737, %v736
    %v1014 = vpack.c.bf16 %v739, %v738
    %v1015 = vpack.c.bf16 %v741, %v740
    %v1016 = vpack.c.bf16 %v743, %v742
    %v1017 = vpack.c.bf16 %v745, %v744
    %v1018 = vpack.c.bf16 %v747, %v746
    %v1019 = vpack.c.bf16 %v749, %v748
    %v1020 = vpack.c.bf16 %v751, %v750
    %v1021 = vpack.c.bf16 %v753, %v752
    %v1022 = vpack.c.bf16 %v755, %v754
    %v1023 = vpack.c.bf16 %v757, %v756
    %v1024 = vpack.c.bf16 %v759, %v758
    %v1025 = vpack.c.bf16 %v761, %v760
    %v1026 = vpack.c.bf16 %v763, %v762
    %v1027 = vpack.c.bf16 %v765, %v764
    %v1028 = vpack.c.bf16 %v767, %v766
    %v1029 = vpack.c.bf16 %v769, %v768
    %v1030 = vpack.c.bf16 %v771, %v770
    %v1031 = vpack.c.bf16 %v773, %v772
    %v1032 = vpack.c.bf16 %v775, %v774
    %v1033 = vpack.c.bf16 %v777, %v776
    %v1034 = vpack.c.bf16 %v779, %v778
    %v1035 = vpack.c.bf16 %v781, %v780
    %v1036 = vpack.c.bf16 %v783, %v782
    %v1037 = vpack.c.bf16 %v785, %v784
    %v1038 = vpack.c.bf16 %v787, %v786
    %v1039 = vpack.c.bf16 %v789, %v788
    %v1040 = vpack.c.bf16 %v791, %v790
    %v1041 = vpack.c.bf16 %v793, %v792
    %v1042 = vpack.c.bf16 %v795, %v794
    %v1043 = vpack.c.bf16 %v797, %v796
    %v1044 = vpack.c.bf16 %v799, %v798
    %v1045 = vpack.c.bf16 %v801, %v800
    %v1046 = vpack.c.bf16 %v803, %v802
    %v1047 = vpack.c.bf16 %v805, %v804
    %v1048 = vpack.c.bf16 %v807, %v806
    %v1049 = vpack.c.bf16 %v809, %v808
    %v1050 = vpack.c.bf16 %v811, %v810
    %v1051 = vpack.c.bf16 %v813, %v812
    %v1052 = vpack.c.bf16 %v815, %v814
    %v1053 = vpack.c.bf16 %v817, %v816
    %v1054 = vpack.c.bf16 %v819, %v818
    %v1055 = vpack.c.bf16 %v821, %v820
    %v1056 = vpack.c.bf16 %v823, %v822
    %v1057 = vpack.c.bf16 %v825, %v824
    %v1058 = vpack.c.bf16 %v827, %v826
    %v1059 = vpack.c.bf16 %v829, %v828
    %v1060 = vpack.c.bf16 %v831, %v830
    %v1061 = vpack.c.bf16 %v833, %v832
    %v1062 = vpack.c.bf16 %v835, %v834
    %v1063 = vpack.c.bf16 %v837, %v836
    %v1064 = vpack.c.bf16 %v839, %v838
    %v1065 = vpack.c.bf16 %v841, %v840
    %v1066 = vpack.c.bf16 %v843, %v842
    %v1067 = vpack.c.bf16 %v845, %v844
    %v1068 = vpack.c.bf16 %v847, %v846
    %v1069 = vpack.c.bf16 %v849, %v848
    %v1070 = vpack.c.bf16 %v851, %v850
    %v1071 = vpack.c.bf16 %v853, %v852
    %v1072 = vpack.c.bf16 %v855, %v854
    %v1073 = vpack.c.bf16 %v857, %v856
    %v1074 = vpack.c.bf16 %v859, %v858
    %v1075 = vpack.c.bf16 %v861, %v860
    %v1076 = vpack.c.bf16 %v863, %v862
    %v1077 = vpack.c.bf16 %v865, %v864
    %v1078 = vpack.c.bf16 %v867, %v866
    %v1079 = vpack.c.bf16 %v869, %v868
    %v1080 = vpack.c.bf16 %v871, %v870
    %v1081 = vpack.c.bf16 %v873, %v872
    %v1082 = vpack.c.bf16 %v875, %v874
    %v1083 = vpack.c.bf16 %v877, %v876
    %v1084 = vpack.c.bf16 %v879, %v878
    %v1085 = vpack.c.bf16 %v881, %v880
    %v1086 = vpack.c.bf16 %v883, %v882
    %v1087 = vpack.c.bf16 %v885, %v884
    %v1088 = vpack.c.bf16 %v887, %v886
    %v1089 = vpack.c.bf16 %v889, %v888
    %v1090 = vpack.c.bf16 %v891, %v890
    %v1091 = vpack.c.bf16 %v893, %v892
    %v1092 = vpack.c.bf16 %v895, %v894
    %v1093 = vpack.c.bf16 %v897, %v896
    %v1094 = vpack.c.bf16 %v899, %v898
    %v1095 = vpack.c.bf16 %v901, %v900
    %v1096 = vpack.c.bf16 %v903, %v902
    %v1097 = vpack.c.bf16 %v905, %v904
    %v1110 = vunpack.c.l.b16 %v30
    %v1111 = vunpack.c.h.b16 %v30
    %v1112 = vunpack.c.l.b16 %v31
    %v1113 = vunpack.c.h.b16 %v31
    %v1114 = vunpack.c.l.b16 %v32
    %v1115 = vunpack.c.h.b16 %v32
    %v1116 = vunpack.c.l.b16 %v33
    %v1117 = vunpack.c.h.b16 %v33
    %v1118 = vunpack.c.l.b16 %v34
    %v1119 = vunpack.c.h.b16 %v34
    %v1120 = vunpack.c.l.b16 %v35
    %v1121 = vunpack.c.h.b16 %v35
    %v1122 = vunpack.c.l.b16 %v36
    %v1123 = vunpack.c.h.b16 %v36
    %v1124 = vunpack.c.l.b16 %v37
    %v1125 = vunpack.c.h.b16 %v37
    %v1126 = vunpack.c.l.b16 %v38
    %v1127 = vunpack.c.h.b16 %v38
    %v1128 = vunpack.c.l.b16 %v39
    %v1129 = vunpack.c.h.b16 %v39
    %v1130 = vunpack.c.l.b16 %v40
    %v1131 = vunpack.c.h.b16 %v40
    %v1132 = vunpack.c.l.b16 %v41
    %v1133 = vunpack.c.h.b16 %v41
    %v1134 = vpack.c.b16 %v1110, %v1110
    %v1135 = vpack.c.b16 %v1111, %v1111
    %v1136 = vpack.c.b16 %v1112, %v1112
    %v1137 = vpack.c.b16 %v1113, %v1113
    %v1138 = vpack.c.b16 %v1114, %v1114
    %v1139 = vpack.c.b16 %v1115, %v1115
    %v1140 = vpack.c.b16 %v1116, %v1116
    %v1141 = vpack.c.b16 %v1117, %v1117
    %v1142 = vpack.c.b16 %v1118, %v1118
    %v1143 = vpack.c.b16 %v1119, %v1119
    %v1144 = vpack.c.b16 %v1120, %v1120
    %v1145 = vpack.c.b16 %v1121, %v1121
    %v1146 = vpack.c.b16 %v1122, %v1122
    %v1147 = vpack.c.b16 %v1123, %v1123
    %v1148 = vpack.c.b16 %v1124, %v1124
    %v1149 = vpack.c.b16 %v1125, %v1125
    %v1150 = vpack.c.b16 %v1126, %v1126
    %v1151 = vpack.c.b16 %v1127, %v1127
    %v1152 = vpack.c.b16 %v1128, %v1128
    %v1153 = vpack.c.b16 %v1129, %v1129
    %v1154 = vpack.c.b16 %v1130, %v1130
    %v1155 = vpack.c.b16 %v1131, %v1131
    %v1156 = vpack.c.b16 %v1132, %v1132
    %v1157 = vpack.c.b16 %v1133, %v1133
    %1182 = vmatpush.bf16.msra.mxu0 %v913
    %1183 = vmatpush.bf16.msra.mxu0 %v912
    %1184 = vmatpush.bf16.msra.mxu0 %v911
    %1185 = vmatpush.bf16.msra.mxu0 %v910
    %1186 = vmatpush.bf16.msra.mxu0 %v909
    %1187 = vmatpush.bf16.msra.mxu0 %v908
    %1188 = vmatpush.bf16.msra.mxu0 %v907
    %1189 = vmatpush.bf16.msra.mxu0 %v906
    %1190 = vmatmul.bf16.gmra.mxu0 %v1134
    %v1191 = vpop.f32.mrf.mxu0
    %v1192 = vadd.f32 0.0, %v1191
    %v1193 = vpop.f32.mrf.mxu0
    %1194 = vdwg.mxu0
    %1195 = vmatpush.bf16.msra.mxu0 %v921
    %1196 = vmatpush.bf16.msra.mxu0 %v920
    %1197 = vmatpush.bf16.msra.mxu0 %v919
    %1198 = vmatpush.bf16.msra.mxu0 %v918
    %1199 = vmatpush.bf16.msra.mxu0 %v917
    %1200 = vmatpush.bf16.msra.mxu0 %v916
    %1201 = vmatpush.bf16.msra.mxu0 %v915
    %1202 = vmatpush.bf16.msra.mxu0 %v914
    %1203 = vmatmul.bf16.gmra.mxu0 %v1135
    %v1204 = vpop.f32.mrf.mxu0
    %v1205 = vadd.f32 %v1192, %v1204
    %v1206 = vpop.f32.mrf.mxu0
    %1207 = vdwg.mxu0
    %1208 = vmatpush.bf16.msra.mxu0 %v929
    %1209 = vmatpush.bf16.msra.mxu0 %v928
    %1210 = vmatpush.bf16.msra.mxu0 %v927
    %1211 = vmatpush.bf16.msra.mxu0 %v926
    %1212 = vmatpush.bf16.msra.mxu0 %v925
    %1213 = vmatpush.bf16.msra.mxu0 %v924
    %1214 = vmatpush.bf16.msra.mxu0 %v923
    %1215 = vmatpush.bf16.msra.mxu0 %v922
    %1216 = vmatmul.bf16.gmra.mxu0 %v1136
    %v1217 = vpop.f32.mrf.mxu0
    %v1218 = vadd.f32 %v1205, %v1217
    %v1219 = vpop.f32.mrf.mxu0
    %1220 = vdwg.mxu0
    %1221 = vmatpush.bf16.msra.mxu0 %v937
    %1222 = vmatpush.bf16.msra.mxu0 %v936
    %1223 = vmatpush.bf16.msra.mxu0 %v935
    %1224 = vmatpush.bf16.msra.mxu0 %v934
    %1225 = vmatpush.bf16.msra.mxu0 %v933
    %1226 = vmatpush.bf16.msra.mxu0 %v932
    %1227 = vmatpush.bf16.msra.mxu0 %v931
    %1228 = vmatpush.bf16.msra.mxu0 %v930
    %1229 = vmatmul.bf16.gmra.mxu0 %v1137
    %v1230 = vpop.f32.mrf.mxu0
    %v1231 = vadd.f32 %v1218, %v1230
    %v1232 = vpop.f32.mrf.mxu0
    %1233 = vdwg.mxu0
    %1234 = vmatpush.bf16.msra.mxu0 %v945
    %1235 = vmatpush.bf16.msra.mxu0 %v944
    %1236 = vmatpush.bf16.msra.mxu0 %v943
    %1237 = vmatpush.bf16.msra.mxu0 %v942
    %1238 = vmatpush.bf16.msra.mxu0 %v941
    %1239 = vmatpush.bf16.msra.mxu0 %v940
    %1240 = vmatpush.bf16.msra.mxu0 %v939
    %1241 = vmatpush.bf16.msra.mxu0 %v938
    %1242 = vmatmul.bf16.gmra.mxu0 %v1138
    %v1243 = vpop.f32.mrf.mxu0
    %v1244 = vadd.f32 %v1231, %v1243
    %v1245 = vpop.f32.mrf.mxu0
    %1246 = vdwg.mxu0
    %1247 = vmatpush.bf16.msra.mxu0 %v953
    %1248 = vmatpush.bf16.msra.mxu0 %v952
    %1249 = vmatpush.bf16.msra.mxu0 %v951
    %1250 = vmatpush.bf16.msra.mxu0 %v950
    %1251 = vmatpush.bf16.msra.mxu0 %v949
    %1252 = vmatpush.bf16.msra.mxu0 %v948
    %1253 = vmatpush.bf16.msra.mxu0 %v947
    %1254 = vmatpush.bf16.msra.mxu0 %v946
    %1255 = vmatmul.bf16.gmra.mxu0 %v1139
    %v1256 = vpop.f32.mrf.mxu0
    %v1257 = vadd.f32 %v1244, %v1256
    %v1258 = vpop.f32.mrf.mxu0
    %1259 = vdwg.mxu0
    %1260 = vmatpush.bf16.msra.mxu0 %v961
    %1261 = vmatpush.bf16.msra.mxu0 %v960
    %1262 = vmatpush.bf16.msra.mxu0 %v959
    %1263 = vmatpush.bf16.msra.mxu0 %v958
    %1264 = vmatpush.bf16.msra.mxu0 %v957
    %1265 = vmatpush.bf16.msra.mxu0 %v956
    %1266 = vmatpush.bf16.msra.mxu0 %v955
    %1267 = vmatpush.bf16.msra.mxu0 %v954
    %1268 = vmatmul.bf16.gmra.mxu0 %v1140
    %v1269 = vpop.f32.mrf.mxu0
    %v1270 = vadd.f32 %v1257, %v1269
    %v1271 = vpop.f32.mrf.mxu0
    %1272 = vdwg.mxu0
    %1273 = vmatpush.bf16.msra.mxu0 %v969
    %1274 = vmatpush.bf16.msra.mxu0 %v968
    %1275 = vmatpush.bf16.msra.mxu0 %v967
    %1276 = vmatpush.bf16.msra.mxu0 %v966
    %1277 = vmatpush.bf16.msra.mxu0 %v965
    %1278 = vmatpush.bf16.msra.mxu0 %v964
    %1279 = vmatpush.bf16.msra.mxu0 %v963
    %1280 = vmatpush.bf16.msra.mxu0 %v962
    %1281 = vmatmul.bf16.gmra.mxu0 %v1141
    %v1282 = vpop.f32.mrf.mxu0
    %v1283 = vadd.f32 %v1270, %v1282
    %v1284 = vpop.f32.mrf.mxu0
    %1285 = vdwg.mxu0
    %1286 = vmatpush.bf16.msra.mxu0 %v977
    %1287 = vmatpush.bf16.msra.mxu0 %v976
    %1288 = vmatpush.bf16.msra.mxu0 %v975
    %1289 = vmatpush.bf16.msra.mxu0 %v974
    %1290 = vmatpush.bf16.msra.mxu0 %v973
    %1291 = vmatpush.bf16.msra.mxu0 %v972
    %1292 = vmatpush.bf16.msra.mxu0 %v971
    %1293 = vmatpush.bf16.msra.mxu0 %v970
    %1294 = vmatmul.bf16.gmra.mxu0 %v1142
    %v1295 = vpop.f32.mrf.mxu0
    %v1296 = vadd.f32 %v1283, %v1295
    %v1297 = vpop.f32.mrf.mxu0
    %1298 = vdwg.mxu0
    %1299 = vmatpush.bf16.msra.mxu0 %v985
    %1300 = vmatpush.bf16.msra.mxu0 %v984
    %1301 = vmatpush.bf16.msra.mxu0 %v983
    %1302 = vmatpush.bf16.msra.mxu0 %v982
    %1303 = vmatpush.bf16.msra.mxu0 %v981
    %1304 = vmatpush.bf16.msra.mxu0 %v980
    %1305 = vmatpush.bf16.msra.mxu0 %v979
    %1306 = vmatpush.bf16.msra.mxu0 %v978
    %1307 = vmatmul.bf16.gmra.mxu0 %v1143
    %v1308 = vpop.f32.mrf.mxu0
    %v1309 = vadd.f32 %v1296, %v1308
    %v1310 = vpop.f32.mrf.mxu0
    %1311 = vdwg.mxu0
    %1312 = vmatpush.bf16.msra.mxu0 %v993
    %1313 = vmatpush.bf16.msra.mxu0 %v992
    %1314 = vmatpush.bf16.msra.mxu0 %v991
    %1315 = vmatpush.bf16.msra.mxu0 %v990
    %1316 = vmatpush.bf16.msra.mxu0 %v989
    %1317 = vmatpush.bf16.msra.mxu0 %v988
    %1318 = vmatpush.bf16.msra.mxu0 %v987
    %1319 = vmatpush.bf16.msra.mxu0 %v986
    %1320 = vmatmul.bf16.gmra.mxu0 %v1144
    %v1321 = vpop.f32.mrf.mxu0
    %v1322 = vadd.f32 %v1309, %v1321
    %v1323 = vpop.f32.mrf.mxu0
    %1324 = vdwg.mxu0
    %1325 = vmatpush.bf16.msra.mxu0 %v1001
    %1326 = vmatpush.bf16.msra.mxu0 %v1000
    %1327 = vmatpush.bf16.msra.mxu0 %v999
    %1328 = vmatpush.bf16.msra.mxu0 %v998
    %1329 = vmatpush.bf16.msra.mxu0 %v997
    %1330 = vmatpush.bf16.msra.mxu0 %v996
    %1331 = vmatpush.bf16.msra.mxu0 %v995
    %1332 = vmatpush.bf16.msra.mxu0 %v994
    %1333 = vmatmul.bf16.gmra.mxu0 %v1145
    %v1334 = vpop.f32.mrf.mxu0
    %v1335 = vadd.f32 %v1322, %v1334
    %v1336 = vpop.f32.mrf.mxu0
    %1337 = vdwg.mxu0
    %1338 = vmatpush.bf16.msra.mxu0 %v1009
    %1339 = vmatpush.bf16.msra.mxu0 %v1008
    %1340 = vmatpush.bf16.msra.mxu0 %v1007
    %1341 = vmatpush.bf16.msra.mxu0 %v1006
    %1342 = vmatpush.bf16.msra.mxu0 %v1005
    %1343 = vmatpush.bf16.msra.mxu0 %v1004
    %1344 = vmatpush.bf16.msra.mxu0 %v1003
    %1345 = vmatpush.bf16.msra.mxu0 %v1002
    %1346 = vmatmul.bf16.gmra.mxu0 %v1146
    %v1347 = vpop.f32.mrf.mxu0
    %v1348 = vadd.f32 %v1335, %v1347
    %v1349 = vpop.f32.mrf.mxu0
    %1350 = vdwg.mxu0
    %1351 = vmatpush.bf16.msra.mxu0 %v1017
    %1352 = vmatpush.bf16.msra.mxu0 %v1016
    %1353 = vmatpush.bf16.msra.mxu0 %v1015
    %1354 = vmatpush.bf16.msra.mxu0 %v1014
    %1355 = vmatpush.bf16.msra.mxu0 %v1013
    %1356 = vmatpush.bf16.msra.mxu0 %v1012
    %1357 = vmatpush.bf16.msra.mxu0 %v1011
    %1358 = vmatpush.bf16.msra.mxu0 %v1010
    %1359 = vmatmul.bf16.gmra.mxu0 %v1147
    %v1360 = vpop.f32.mrf.mxu0
    %v1361 = vadd.f32 %v1348, %v1360
    %v1362 = vpop.f32.mrf.mxu0
    %1363 = vdwg.mxu0
    %1364 = vmatpush.bf16.msra.mxu0 %v1025
    %1365 = vmatpush.bf16.msra.mxu0 %v1024
    %1366 = vmatpush.bf16.msra.mxu0 %v1023
    %1367 = vmatpush.bf16.msra.mxu0 %v1022
    %1368 = vmatpush.bf16.msra.mxu0 %v1021
    %1369 = vmatpush.bf16.msra.mxu0 %v1020
    %1370 = vmatpush.bf16.msra.mxu0 %v1019
    %1371 = vmatpush.bf16.msra.mxu0 %v1018
    %1372 = vmatmul.bf16.gmra.mxu0 %v1148
    %v1373 = vpop.f32.mrf.mxu0
    %v1374 = vadd.f32 %v1361, %v1373
    %v1375 = vpop.f32.mrf.mxu0
    %1376 = vdwg.mxu0
    %1377 = vmatpush.bf16.msra.mxu0 %v1033
    %1378 = vmatpush.bf16.msra.mxu0 %v1032
    %1379 = vmatpush.bf16.msra.mxu0 %v1031
    %1380 = vmatpush.bf16.msra.mxu0 %v1030
    %1381 = vmatpush.bf16.msra.mxu0 %v1029
    %1382 = vmatpush.bf16.msra.mxu0 %v1028
    %1383 = vmatpush.bf16.msra.mxu0 %v1027
    %1384 = vmatpush.bf16.msra.mxu0 %v1026
    %1385 = vmatmul.bf16.gmra.mxu0 %v1149
    %v1386 = vpop.f32.mrf.mxu0
    %v1387 = vadd.f32 %v1374, %v1386
    %v1388 = vpop.f32.mrf.mxu0
    %1389 = vdwg.mxu0
    %1390 = vmatpush.bf16.msra.mxu0 %v1041
    %1391 = vmatpush.bf16.msra.mxu0 %v1040
    %1392 = vmatpush.bf16.msra.mxu0 %v1039
    %1393 = vmatpush.bf16.msra.mxu0 %v1038
    %1394 = vmatpush.bf16.msra.mxu0 %v1037
    %1395 = vmatpush.bf16.msra.mxu0 %v1036
    %1396 = vmatpush.bf16.msra.mxu0 %v1035
    %1397 = vmatpush.bf16.msra.mxu0 %v1034
    %1398 = vmatmul.bf16.gmra.mxu0 %v1150
    %v1399 = vpop.f32.mrf.mxu0
    %v1400 = vadd.f32 %v1387, %v1399
    %v1401 = vpop.f32.mrf.mxu0
    %1402 = vdwg.mxu0
    %1403 = vmatpush.bf16.msra.mxu0 %v1049
    %1404 = vmatpush.bf16.msra.mxu0 %v1048
    %1405 = vmatpush.bf16.msra.mxu0 %v1047
    %1406 = vmatpush.bf16.msra.mxu0 %v1046
    %1407 = vmatpush.bf16.msra.mxu0 %v1045
    %1408 = vmatpush.bf16.msra.mxu0 %v1044
    %1409 = vmatpush.bf16.msra.mxu0 %v1043
    %1410 = vmatpush.bf16.msra.mxu0 %v1042
    %1411 = vmatmul.bf16.gmra.mxu0 %v1151
    %v1412 = vpop.f32.mrf.mxu0
    %v1413 = vadd.f32 %v1400, %v1412
    %v1414 = vpop.f32.mrf.mxu0
    %1415 = vdwg.mxu0
    %1416 = vmatpush.bf16.msra.mxu0 %v1057
    %1417 = vmatpush.bf16.msra.mxu0 %v1056
    %1418 = vmatpush.bf16.msra.mxu0 %v1055
    %1419 = vmatpush.bf16.msra.mxu0 %v1054
    %1420 = vmatpush.bf16.msra.mxu0 %v1053
    %1421 = vmatpush.bf16.msra.mxu0 %v1052
    %1422 = vmatpush.bf16.msra.mxu0 %v1051
    %1423 = vmatpush.bf16.msra.mxu0 %v1050
    %1424 = vmatmul.bf16.gmra.mxu0 %v1152
    %v1425 = vpop.f32.mrf.mxu0
    %v1426 = vadd.f32 %v1413, %v1425
    %v1427 = vpop.f32.mrf.mxu0
    %1428 = vdwg.mxu0
    %1429 = vmatpush.bf16.msra.mxu0 %v1065
    %1430 = vmatpush.bf16.msra.mxu0 %v1064
    %1431 = vmatpush.bf16.msra.mxu0 %v1063
    %1432 = vmatpush.bf16.msra.mxu0 %v1062
    %1433 = vmatpush.bf16.msra.mxu0 %v1061
    %1434 = vmatpush.bf16.msra.mxu0 %v1060
    %1435 = vmatpush.bf16.msra.mxu0 %v1059
    %1436 = vmatpush.bf16.msra.mxu0 %v1058
    %1437 = vmatmul.bf16.gmra.mxu0 %v1153
    %v1438 = vpop.f32.mrf.mxu0
    %v1439 = vadd.f32 %v1426, %v1438
    %v1440 = vpop.f32.mrf.mxu0
    %1441 = vdwg.mxu0
    %1442 = vmatpush.bf16.msra.mxu0 %v1073
    %1443 = vmatpush.bf16.msra.mxu0 %v1072
    %1444 = vmatpush.bf16.msra.mxu0 %v1071
    %1445 = vmatpush.bf16.msra.mxu0 %v1070
    %1446 = vmatpush.bf16.msra.mxu0 %v1069
    %1447 = vmatpush.bf16.msra.mxu0 %v1068
    %1448 = vmatpush.bf16.msra.mxu0 %v1067
    %1449 = vmatpush.bf16.msra.mxu0 %v1066
    %1450 = vmatmul.bf16.gmra.mxu0 %v1154
    %v1451 = vpop.f32.mrf.mxu0
    %v1452 = vadd.f32 %v1439, %v1451
    %v1453 = vpop.f32.mrf.mxu0
    %1454 = vdwg.mxu0
    %1455 = vmatpush.bf16.msra.mxu0 %v1081
    %1456 = vmatpush.bf16.msra.mxu0 %v1080
    %1457 = vmatpush.bf16.msra.mxu0 %v1079
    %1458 = vmatpush.bf16.msra.mxu0 %v1078
    %1459 = vmatpush.bf16.msra.mxu0 %v1077
    %1460 = vmatpush.bf16.msra.mxu0 %v1076
    %1461 = vmatpush.bf16.msra.mxu0 %v1075
    %1462 = vmatpush.bf16.msra.mxu0 %v1074
    %1463 = vmatmul.bf16.gmra.mxu0 %v1155
    %v1464 = vpop.f32.mrf.mxu0
    %v1465 = vadd.f32 %v1452, %v1464
    %v1466 = vpop.f32.mrf.mxu0
    %1467 = vdwg.mxu0
    %1468 = vmatpush.bf16.msra.mxu0 %v1089
    %1469 = vmatpush.bf16.msra.mxu0 %v1088
    %1470 = vmatpush.bf16.msra.mxu0 %v1087
    %1471 = vmatpush.bf16.msra.mxu0 %v1086
    %1472 = vmatpush.bf16.msra.mxu0 %v1085
    %1473 = vmatpush.bf16.msra.mxu0 %v1084
    %1474 = vmatpush.bf16.msra.mxu0 %v1083
    %1475 = vmatpush.bf16.msra.mxu0 %v1082
    %1476 = vmatmul.bf16.gmra.mxu0 %v1156
    %v1477 = vpop.f32.mrf.mxu0
    %v1478 = vadd.f32 %v1465, %v1477
    %v1479 = vpop.f32.mrf.mxu0
    %1480 = vdwg.mxu0
    %1481 = vmatpush.bf16.msra.mxu0 %v1097
    %1482 = vmatpush.bf16.msra.mxu0 %v1096
    %1483 = vmatpush.bf16.msra.mxu0 %v1095
    %1484 = vmatpush.bf16.msra.mxu0 %v1094
    %1485 = vmatpush.bf16.msra.mxu0 %v1093
    %1486 = vmatpush.bf16.msra.mxu0 %v1092
    %1487 = vmatpush.bf16.msra.mxu0 %v1091
    %1488 = vmatpush.bf16.msra.mxu0 %v1090
    %1489 = vmatmul.bf16.gmra.mxu0 %v1157
    %v1490 = vpop.f32.mrf.mxu0
    %v1491 = vadd.f32 %v1478, %v1490
    %v1492 = vpop.f32.mrf.mxu0
    %1493 = vdwg.mxu0
    %v1494 = vld [vmem:[%s2] sm:$0x1]
    %v1496 = vperm.slane %v1494, 0
    %v1498 = vmul.f32 %v1491, %v1496
    %v1499 = vld [vmem:[%s3] sm:$0x1]
    %v1501 = vperm.slane %v1499, 0
    %v1503 = vadd.f32 %v1498, %v1501
    %v1504 = vrot.slane %v1503, 4
    %v1505 = vadd.f32 %v1503, %v1504
    %v1506 = vrot.slane %v1505, 2
    %v1507 = vadd.f32 %v1505, %v1506
    %v1508 = vrot.slane %v1507, 1
    %v1509 = vadd.f32 %v1507, %v1508
    %v1510 = vrcp.pop 8.0
    %v1511 = vmul.f32 8.0, %v1510
    %v1512 = vsub.f32 1.0, %v1511
    %v1513 = vmul.f32 %v1510, %v1512
    %v1514 = vadd.f32 %v1510, %v1513
    %vm1515 = vweird.f32 %v1510
    %v1516 = vsel %vm1515, %v1510, %v1514
    %v1517 = vmul.f32 %v1509, %v1516
    %v1518 = vsub.f32 %v1503, %v1517
    %v1519 = vmul.f32 %v1518, %v1518
    %v1520 = vrot.slane %v1519, 4
    %v1521 = vadd.f32 %v1519, %v1520
    %v1522 = vrot.slane %v1521, 2
    %v1523 = vadd.f32 %v1521, %v1522
    %v1524 = vrot.slane %v1523, 1
    %v1525 = vadd.f32 %v1523, %v1524
    %v1526 = vmul.f32 %v1525, %v1516
    %v1527 = vadd.f32 %v1526, 1e-05
    %v1528 = vrsqrt.pop %v1527
    %v1529 = vmul.f32 %v1528, %v1527
    %v1530 = vmul.f32 %v1529, %v1528
    %v1531 = vmul.f32 0.5, %v1530
    %v1532 = vsub.f32 1.5, %v1531
    %v1533 = vmul.f32 %v1528, %v1532
    %vm1534 = vweird.f32 %v1527
    %vm1535 = vweird.f32 %v1528
    %vm1536 = vmor %vm1534, %vm1535
    %v1537 = vsel %vm1536, %v1528, %v1533
    %v1538 = vmul.f32 %v1518, %v1537
    %v1539 = vxor.u32 %v1538, 2147483648
    %v1540 = vmul.f32 %v1539, 1.442695
    %v1541 = vpow.pop %v1540
    %v1542 = vadd.f32 %v1541, 1.0
    %v1543 = vrcp.pop %v1542
    %v1544 = vmul.f32 %v1542, %v1543
    %v1545 = vsub.f32 1.0, %v1544
    %v1546 = vmul.f32 %v1543, %v1545
    %v1547 = vadd.f32 %v1543, %v1546
    %vm1548 = vweird.f32 %v1542
    %vm1549 = vweird.f32 %v1543
    %vm1550 = vmor %vm1548, %vm1549
    %v1551 = vsel %vm1550, %v1543, %v1547
    %v1552 = vand.u32 2147483647, %v1542
    %vm1553 = vcmp.eq.f32.partialorder %v1552, 8.507059e+37
    %v1554 = vand.u32 %v1542, 2147483648
    %v1555 = vor.u32 1.1754944e-38, %v1554
    %v1556 = vsel %vm1553, %v1555, %v1551
    %v1557 = vmul.f32 1.0, %v1556
    %v1558 = vmul.f32 %v1538, %v1557
    %v1559 = vpack.c.bf16 %v1558, %v1558
    %v1560 = vld [vmem:[%s4] sm:$0xf]
    %v1561 = vld [vmem:[%s4 + $0x4] sm:$0xf]
    %v1562 = vld [vmem:[%s4 + $0x8] sm:$0xf]
    %v1563 = vld [vmem:[%s4 + $0xc] sm:$0xf]
    %v1564 = vld [vmem:[%s4 + $0x10] sm:$0xf]
    %v1565 = vld [vmem:[%s4 + $0x14] sm:$0xf]
    %v1566 = vld [vmem:[%s4 + $0x18] sm:$0xf]
    %v1567 = vld [vmem:[%s4 + $0x1c] sm:$0xf]
    %v1568 = vld [vmem:[%s4 + $0x20] sm:$0xf]
    %v1569 = vld [vmem:[%s4 + $0x24] sm:$0xf]
    %v1570 = vld [vmem:[%s4 + $0x28] sm:$0xf]
    %v1571 = vld [vmem:[%s4 + $0x2c] sm:$0xf]
    %v1572 = vld [vmem:[%s4 + $0x30] sm:$0xf]
    %v1573 = vld [vmem:[%s4 + $0x34] sm:$0xf]
    %v1574 = vld [vmem:[%s4 + $0x38] sm:$0xf]
    %v1575 = vld [vmem:[%s4 + $0x3c] sm:$0xf]
    %v1576 = vld [vmem:[%s5] sm:$0x1]
    %v1578 = vperm.slane %v1576, 0
    %v1596 = vunpack.c.l.b16 %v1560
    %v1597 = vunpack.c.l.b16 %v1561
    %v1598 = vunpack.c.l.b16 %v1562
    %v1599 = vunpack.c.l.b16 %v1563
    %v1600 = vunpack.c.l.b16 %v1564
    %v1601 = vunpack.c.l.b16 %v1565
    %v1602 = vunpack.c.l.b16 %v1566
    %v1603 = vunpack.c.l.b16 %v1567
    %v1604 = vunpack.c.l.b16 %v1568
    %v1605 = vunpack.c.l.b16 %v1569
    %v1606 = vunpack.c.l.b16 %v1570
    %v1607 = vunpack.c.l.b16 %v1571
    %v1608 = vunpack.c.l.b16 %v1572
    %v1609 = vunpack.c.l.b16 %v1573
    %v1610 = vunpack.c.l.b16 %v1574
    %v1611 = vunpack.c.l.b16 %v1575
    %v1612 = vpack.c.b16 %v1597, %v1596
    %v1613 = vpack.c.b16 %v1599, %v1598
    %v1614 = vpack.c.b16 %v1601, %v1600
    %v1615 = vpack.c.b16 %v1603, %v1602
    %v1616 = vpack.c.b16 %v1605, %v1604
    %v1617 = vpack.c.b16 %v1607, %v1606
    %v1618 = vpack.c.b16 %v1609, %v1608
    %v1619 = vpack.c.b16 %v1611, %v1610
    %1628 = vmatpush.bf16.msra.mxu0 %v1619
    %1629 = vmatpush.bf16.msra.mxu0 %v1618
    %1630 = vmatpush.bf16.msra.mxu0 %v1617
    %1631 = vmatpush.bf16.msra.mxu0 %v1616
    %1632 = vmatpush.bf16.msra.mxu0 %v1615
    %1633 = vmatpush.bf16.msra.mxu0 %v1614
    %1634 = vmatpush.bf16.msra.mxu0 %v1613
    %1635 = vmatpush.bf16.msra.mxu0 %v1612
    %1636 = vmatmul.bf16.gmra.mxu0 %v1559
    %v1637 = vpop.f32.mrf.mxu0
    %v1638 = vadd.f32 %v1578, %v1637
    %v1639 = vpop.f32.mrf.mxu0
    %1640 = vdwg.mxu0
    %v1641 = vrot.slane %v1638, 4
    %v1642 = vadd.f32 %v1638, %v1641
    %v1643 = vrot.slane %v1642, 2
    %v1644 = vadd.f32 %v1642, %v1643
    %v1645 = vrot.slane %v1644, 1
    %v1646 = vadd.f32 %v1644, %v1645
    %v1647 = vmul.f32 %v1646, %v1516
    %v1648 = vsub.f32 %v1638, %v1647
    %v1649 = vmul.f32 %v1648, %v1648
    %v1650 = vrot.slane %v1649, 4
    %v1651 = vadd.f32 %v1649, %v1650
    %v1652 = vrot.slane %v1651, 2
    %v1653 = vadd.f32 %v1651, %v1652
    %v1654 = vrot.slane %v1653, 1
    %v1655 = vadd.f32 %v1653, %v1654
    %v1656 = vmul.f32 %v1655, %v1516
    %v1657 = vadd.f32 %v1656, 1e-05
    %v1658 = vrsqrt.pop %v1657
    %v1659 = vmul.f32 %v1658, %v1657
    %v1660 = vmul.f32 %v1659, %v1658
    %v1661 = vmul.f32 0.5, %v1660
    %v1662 = vsub.f32 1.5, %v1661
    %v1663 = vmul.f32 %v1658, %v1662
    %vm1664 = vweird.f32 %v1657
    %vm1665 = vweird.f32 %v1658
    %vm1666 = vmor %vm1664, %vm1665
    %v1667 = vsel %vm1666, %v1658, %v1663
    %v1668 = vmul.f32 %v1648, %v1667
    %v1669 = vxor.u32 %v1668, 2147483648
    %v1670 = vmul.f32 %v1669, 1.442695
    %v1671 = vpow.pop %v1670
    %v1672 = vadd.f32 %v1671, 1.0
    %v1673 = vrcp.pop %v1672
    %v1674 = vmul.f32 %v1672, %v1673
    %v1675 = vsub.f32 1.0, %v1674
    %v1676 = vmul.f32 %v1673, %v1675
    %v1677 = vadd.f32 %v1673, %v1676
    %vm1678 = vweird.f32 %v1672
    %vm1679 = vweird.f32 %v1673
    %vm1680 = vmor %vm1678, %vm1679
    %v1681 = vsel %vm1680, %v1673, %v1677
    %v1682 = vand.u32 2147483647, %v1672
    %vm1683 = vcmp.eq.f32.partialorder %v1682, 8.507059e+37
    %v1684 = vand.u32 %v1672, 2147483648
    %v1685 = vor.u32 1.1754944e-38, %v1684
    %v1686 = vsel %vm1683, %v1685, %v1681
    %v1687 = vmul.f32 1.0, %v1686
    %v1688 = vmul.f32 %v1668, %v1687
    %v1689 = vpack.c.bf16 %v1688, %v1688
    %s1690 = scalar_lea.vmem %s4, 64
    %v1691 = vld [vmem:[%s1690] sm:$0xf]
    %v1692 = vld [vmem:[%s1690 + $0x4] sm:$0xf]
    %v1693 = vld [vmem:[%s1690 + $0x8] sm:$0xf]
    %v1694 = vld [vmem:[%s1690 + $0xc] sm:$0xf]
    %v1695 = vld [vmem:[%s1690 + $0x10] sm:$0xf]
    %v1696 = vld [vmem:[%s1690 + $0x14] sm:$0xf]
    %v1697 = vld [vmem:[%s1690 + $0x18] sm:$0xf]
    %v1698 = vld [vmem:[%s1690 + $0x1c] sm:$0xf]
    %v1699 = vld [vmem:[%s1690 + $0x20] sm:$0xf]
    %v1700 = vld [vmem:[%s1690 + $0x24] sm:$0xf]
    %v1701 = vld [vmem:[%s1690 + $0x28] sm:$0xf]
    %v1702 = vld [vmem:[%s1690 + $0x2c] sm:$0xf]
    %v1703 = vld [vmem:[%s1690 + $0x30] sm:$0xf]
    %v1704 = vld [vmem:[%s1690 + $0x34] sm:$0xf]
    %v1705 = vld [vmem:[%s1690 + $0x38] sm:$0xf]
    %v1706 = vld [vmem:[%s1690 + $0x3c] sm:$0xf]
    %s1707 = scalar_lea.vmem %s5, 1
    %v1708 = vld [vmem:[%s1707] sm:$0x1]
    %v1710 = vperm.slane %v1708, 0
    %v1728 = vunpack.c.l.b16 %v1691
    %v1729 = vunpack.c.l.b16 %v1692
    %v1730 = vunpack.c.l.b16 %v1693
    %v1731 = vunpack.c.l.b16 %v1694
    %v1732 = vunpack.c.l.b16 %v1695
    %v1733 = vunpack.c.l.b16 %v1696
    %v1734 = vunpack.c.l.b16 %v1697
    %v1735 = vunpack.c.l.b16 %v1698
    %v1736 = vunpack.c.l.b16 %v1699
    %v1737 = vunpack.c.l.b16 %v1700
    %v1738 = vunpack.c.l.b16 %v1701
    %v1739 = vunpack.c.l.b16 %v1702
    %v1740 = vunpack.c.l.b16 %v1703
    %v1741 = vunpack.c.l.b16 %v1704
    %v1742 = vunpack.c.l.b16 %v1705
    %v1743 = vunpack.c.l.b16 %v1706
    %v1744 = vpack.c.b16 %v1729, %v1728
    %v1745 = vpack.c.b16 %v1731, %v1730
    %v1746 = vpack.c.b16 %v1733, %v1732
    %v1747 = vpack.c.b16 %v1735, %v1734
    %v1748 = vpack.c.b16 %v1737, %v1736
    %v1749 = vpack.c.b16 %v1739, %v1738
    %v1750 = vpack.c.b16 %v1741, %v1740
    %v1751 = vpack.c.b16 %v1743, %v1742
    %1760 = vmatpush.bf16.msra.mxu0 %v1751
    %1761 = vmatpush.bf16.msra.mxu0 %v1750
    %1762 = vmatpush.bf16.msra.mxu0 %v1749
    %1763 = vmatpush.bf16.msra.mxu0 %v1748
    %1764 = vmatpush.bf16.msra.mxu0 %v1747
    %1765 = vmatpush.bf16.msra.mxu0 %v1746
    %1766 = vmatpush.bf16.msra.mxu0 %v1745
    %1767 = vmatpush.bf16.msra.mxu0 %v1744
    %1768 = vmatmul.bf16.gmra.mxu0 %v1689
    %v1769 = vpop.f32.mrf.mxu0
    %v1770 = vadd.f32 %v1710, %v1769
    %v1771 = vpop.f32.mrf.mxu0
    %1772 = vdwg.mxu0
    %v1773 = vrot.slane %v1770, 4
    %v1774 = vadd.f32 %v1770, %v1773
    %v1775 = vrot.slane %v1774, 2
    %v1776 = vadd.f32 %v1774, %v1775
    %v1777 = vrot.slane %v1776, 1
    %v1778 = vadd.f32 %v1776, %v1777
    %v1779 = vmul.f32 %v1778, %v1516
    %v1780 = vsub.f32 %v1770, %v1779
    %v1781 = vmul.f32 %v1780, %v1780
    %v1782 = vrot.slane %v1781, 4
    %v1783 = vadd.f32 %v1781, %v1782
    %v1784 = vrot.slane %v1783, 2
    %v1785 = vadd.f32 %v1783, %v1784
    %v1786 = vrot.slane %v1785, 1
    %v1787 = vadd.f32 %v1785, %v1786
    %v1788 = vmul.f32 %v1787, %v1516
    %v1789 = vadd.f32 %v1788, 1e-05
    %v1790 = vrsqrt.pop %v1789
    %v1791 = vmul.f32 %v1790, %v1789
    %v1792 = vmul.f32 %v1791, %v1790
    %v1793 = vmul.f32 0.5, %v1792
    %v1794 = vsub.f32 1.5, %v1793
    %v1795 = vmul.f32 %v1790, %v1794
    %vm1796 = vweird.f32 %v1789
    %vm1797 = vweird.f32 %v1790
    %vm1798 = vmor %vm1796, %vm1797
    %v1799 = vsel %vm1798, %v1790, %v1795
    %v1800 = vmul.f32 %v1780, %v1799
    %v1801 = vxor.u32 %v1800, 2147483648
    %v1802 = vmul.f32 %v1801, 1.442695
    %v1803 = vpow.pop %v1802
    %v1804 = vadd.f32 %v1803, 1.0
    %v1805 = vrcp.pop %v1804
    %v1806 = vmul.f32 %v1804, %v1805
    %v1807 = vsub.f32 1.0, %v1806
    %v1808 = vmul.f32 %v1805, %v1807
    %v1809 = vadd.f32 %v1805, %v1808
    %vm1810 = vweird.f32 %v1804
    %vm1811 = vweird.f32 %v1805
    %vm1812 = vmor %vm1810, %vm1811
    %v1813 = vsel %vm1812, %v1805, %v1809
    %v1814 = vand.u32 2147483647, %v1804
    %vm1815 = vcmp.eq.f32.partialorder %v1814, 8.507059e+37
    %v1816 = vand.u32 %v1804, 2147483648
    %v1817 = vor.u32 1.1754944e-38, %v1816
    %v1818 = vsel %vm1815, %v1817, %v1813
    %v1819 = vmul.f32 1.0, %v1818
    %v1820 = vmul.f32 %v1800, %v1819
    %v1821 = vpack.c.bf16 %v1820, %v1820
    %v1822 = vld [vmem:[%s6] sm:$0xf]
    %v1823 = vld [vmem:[%s6 + $0x4] sm:$0xf]
    %v1824 = vld [vmem:[%s6 + $0x8] sm:$0xf]
    %v1825 = vld [vmem:[%s6 + $0xc] sm:$0xf]
    %v1826 = vld [vmem:[%s6 + $0x10] sm:$0xf]
    %v1827 = vld [vmem:[%s6 + $0x14] sm:$0xf]
    %v1828 = vld [vmem:[%s6 + $0x18] sm:$0xf]
    %v1829 = vld [vmem:[%s6 + $0x1c] sm:$0xf]
    %v1830 = vld [vmem:[%s6 + $0x20] sm:$0xf]
    %v1831 = vld [vmem:[%s6 + $0x24] sm:$0xf]
    %v1832 = vld [vmem:[%s6 + $0x28] sm:$0xf]
    %v1833 = vld [vmem:[%s6 + $0x2c] sm:$0xf]
    %v1834 = vld [vmem:[%s6 + $0x30] sm:$0xf]
    %v1835 = vld [vmem:[%s6 + $0x34] sm:$0xf]
    %v1836 = vld [vmem:[%s6 + $0x38] sm:$0xf]
    %v1837 = vld [vmem:[%s6 + $0x3c] sm:$0xf]
    %v1838 = vld [vmem:[%s7] sm:$0x1]
    %v1840 = vperm.slane %v1838, 0
    %v1858 = vunpack.c.l.b16 %v1822
    %v1859 = vunpack.c.l.b16 %v1823
    %v1860 = vunpack.c.l.b16 %v1824
    %v1861 = vunpack.c.l.b16 %v1825
    %v1862 = vunpack.c.l.b16 %v1826
    %v1863 = vunpack.c.l.b16 %v1827
    %v1864 = vunpack.c.l.b16 %v1828
    %v1865 = vunpack.c.l.b16 %v1829
    %v1866 = vunpack.c.l.b16 %v1830
    %v1867 = vunpack.c.l.b16 %v1831
    %v1868 = vunpack.c.l.b16 %v1832
    %v1869 = vunpack.c.l.b16 %v1833
    %v1870 = vunpack.c.l.b16 %v1834
    %v1871 = vunpack.c.l.b16 %v1835
    %v1872 = vunpack.c.l.b16 %v1836
    %v1873 = vunpack.c.l.b16 %v1837
    %v1874 = vpack.c.b16 %v1859, %v1858
    %v1875 = vpack.c.b16 %v1861, %v1860
    %v1876 = vpack.c.b16 %v1863, %v1862
    %v1877 = vpack.c.b16 %v1865, %v1864
    %v1878 = vpack.c.b16 %v1867, %v1866
    %v1879 = vpack.c.b16 %v1869, %v1868
    %v1880 = vpack.c.b16 %v1871, %v1870
    %v1881 = vpack.c.b16 %v1873, %v1872
    %1890 = vmatpush.bf16.msra.mxu0 %v1881
    %1891 = vmatpush.bf16.msra.mxu0 %v1880
    %1892 = vmatpush.bf16.msra.mxu0 %v1879
    %1893 = vmatpush.bf16.msra.mxu0 %v1878
    %1894 = vmatpush.bf16.msra.mxu0 %v1877
    %1895 = vmatpush.bf16.msra.mxu0 %v1876
    %1896 = vmatpush.bf16.msra.mxu0 %v1875
    %1897 = vmatpush.bf16.msra.mxu0 %v1874
    %1898 = vmatmul.bf16.gmra.mxu0 %v1821
    %v1899 = vpop.f32.mrf.mxu0
    %v1900 = vadd.f32 %v1840, %v1899
    %v1901 = vpop.f32.mrf.mxu0
    %1902 = vdwg.mxu0
    %1903 = vst [vmem:[#allocation2] sm:$0xff] %v1900
    // Predicated region
    $region34: #{ffnn_forward.1} parent=1 // pred_check
      _
    $region35: #{ffnn_forward.1} parent=1 // pred_check_branch
      %1905 = sbr.rel (0) target = $region37
    $region36: #{ffnn_forward.1} parent=1 // pred_region
      %1907 = vsyncadd [#allocation3], 0
      %s1909 = sshll.u32 [#allocation2], 4
      %s1910 = int_to_ptr.vmem [resolvable:$true] %s1909
      %s1911 = sshll.u32 %s8, 4
      %s1912 = int_to_ptr.hbm [resolvable:$true] %s1911
      %1914 = dma.vmem_to_hbm [thread:$0]  %s1910, 128, %s1912, [#allocation3]
    $region37: #{ffnn_forward.1} parent=1 // pred_fallthru
      _
    // Predicated region
    $region38: #{ffnn_forward.1} parent=1 // pred_check
      _
    $region39: #{ffnn_forward.1} parent=1 // pred_check_branch
      %1916 = sbr.rel (0) target = $region41
    $region40: #{ffnn_forward.1} parent=1 // pred_region
      %1918 = dma.done [#allocation3], 128
    $region41: #{ffnn_forward.1} parent=1 // pred_fallthru
      _
    %1919 = vsyncpa [#allocation3], 1

</llo_original>
